<compile_context>
chip_gen: v6e
topology: v6e:2x2x1
jax: 0.10.0
libtpu: 0.0.40
codegen_flags: <defaults>
</compile_context>

<pallas_src>
import functools

import jax
import jax.numpy as jnp
from jax.experimental import pallas as pl
from jax.experimental.pallas import tpu as pltpu


# ---------------------------------------------------------------------------
# Fused Pallas kernel: whole forward for one batch element, VMEM resident.
# ---------------------------------------------------------------------------
def _grading_fused_kernel(xs_ref, ws_ref, bs_ref, wdw_ref, bdw_ref,
                          wpw_ref, bpw_ref, wfc_ref, bfc_ref,
                          o_ref, sp_ref):
    Hp, Wp, Cp = sp_ref.shape            # (Ho+2, Wo+2, 128)
    Ho, Wo = Hp - 2, Wp - 2
    Ks = xs_ref.shape[-1]                # 4 * Cin (space-to-depth channels)

    # ---- stem: stride-2 3x3 conv as a stride-1 2x2 conv on the space-to-depth
    #      input (unit-stride slices, no strided loads, no im2col).  MXU. -----
    acc = jnp.zeros((Ho * Wo, Cp), jnp.float32)
    for t in range(4):                                       # static 2x2 taps
        dh, dw = divmod(t, 2)
        patch = xs_ref[0, dh:dh + Ho, dw:dw + Wo, :]         # (Ho, Wo, Ks)
        patch = patch.reshape(Ho * Wo, Ks).astype(jnp.bfloat16)
        acc += jnp.dot(patch, ws_ref[t], preferred_element_type=jnp.float32)
    acc = acc + bs_ref[...]
    acc = acc * jax.nn.sigmoid(acc)                          # SiLU (EUP slot)

    # ---- depthwise 3x3, stride 1, pad 1 + SiLU.  Pure VPU MACs in f32, with
    #      the zero halo built in a VMEM scratch buffer. ----------------------
    sp_ref[...] = jnp.zeros_like(sp_ref)
    sp_ref[1:1 + Ho, 1:1 + Wo, :] = acc.reshape(Ho, Wo, Cp)
    wdw = wdw_ref[...]                                       # (9, Cp) f32
    dacc = jnp.zeros((Ho, Wo, Cp), jnp.float32)
    for k in range(9):                                       # static 3x3 taps
        kh, kw = divmod(k, 3)
        dacc += sp_ref[kh:kh + Ho, kw:kw + Wo, :] * wdw[k]
    dacc = dacc + bdw_ref[0]
    dacc = dacc * jax.nn.sigmoid(dacc)

    # ---- pointwise 1x1 conv + SiLU (lane-dense 128x128 MXU matmul). --------
    feat = dacc.reshape(Ho * Wo, Cp).astype(jnp.bfloat16)
    h = jnp.dot(feat, wpw_ref[...], preferred_element_type=jnp.float32)
    h = h + bpw_ref[...]
    h = h * jax.nn.sigmoid(h)

    # ---- global average pool (XLU reduce), Dropout(eval)=identity, Linear. --
    pooled = jnp.sum(h, axis=0, keepdims=True) * (1.0 / (Ho * Wo))   # (1, Cp)
    logits = jnp.dot(pooled, wfc_ref[...],
                     preferred_element_type=jnp.float32) + bfc_ref[...]
    # Broadcast to an (8, 128) tile so the output store is full-tile/lane-dense.
    o_ref[...] = jnp.broadcast_to(logits, o_ref.shape).astype(o_ref.dtype)


# ---------------------------------------------------------------------------
# Parameter construction / packing into the kernel (lane-padded) layout.
# ---------------------------------------------------------------------------
def init_params(key, cin=3, c_stem=32, c_head=64, num_classes=3):
    ks = jax.random.split(key, 8)
    return {
        # conv weights with BatchNorm pre-folded into (w, b)
        "stem_w": jax.random.normal(ks[0], (3, 3, cin, c_stem), jnp.float32) * 0.1,
        "stem_b": jax.random.normal(ks[1], (c_stem,), jnp.float32) * 0.01,
        "dw_w":   jax.random.normal(ks[2], (3, 3, c_stem), jnp.float32) * 0.1,
        "dw_b":   jax.random.normal(ks[3], (c_stem,), jnp.float32) * 0.01,
        "pw_w":   jax.random.normal(ks[4], (c_stem, c_head), jnp.float32) * 0.1,
        "pw_b":   jax.random.normal(ks[5], (c_head,), jnp.float32) * 0.01,
        "fc_w":   jax.random.normal(ks[6], (c_head, num_classes), jnp.float32) * 0.1,
        "fc_b":   jax.random.normal(ks[7], (num_classes,), jnp.float32) * 0.01,
    }


def pack_params(p, cin=3, lanes=128):
    """Pad all channel dims to 128 lanes (zero-padded -> numerically exact) and
    rearrange the stem weight for the space-to-depth formulation."""
    c_stem = p["stem_w"].shape[-1]
    c_head = p["pw_w"].shape[-1]
    num_classes = p["fc_w"].shape[-1]

    # stride-2 3x3 conv  ==  stride-1 2x2 conv over 2x2 space-to-depth input.
    ws = jnp.zeros((2, 2, 4 * cin, lanes), jnp.float32)
    for kh in range(3):
        for kw in range(3):
            dh, ph = divmod(kh, 2)
            dw, pw = divmod(kw, 2)
            c0 = (ph * 2 + pw) * cin
            ws = ws.at[dh, dw, c0:c0 + cin, :c_stem].set(p["stem_w"][kh, kw])
    ws = ws.reshape(4, 4 * cin, lanes)

    def pad_vec(v):
        return jnp.zeros((1, lanes), jnp.float32).at[0, :v.shape[0]].set(v)

    w_dw = jnp.zeros((9, lanes), jnp.float32).at[:, :c_stem].set(
        p["dw_w"].reshape(9, c_stem))
    w_pw = jnp.zeros((lanes, lanes), jnp.float32).at[:c_stem, :c_head].set(p["pw_w"])
    w_fc = jnp.zeros((lanes, lanes), jnp.float32).at[:c_head, :num_classes].set(p["fc_w"])

    return {
        "w_stem": ws.astype(jnp.bfloat16),       # MXU operand (bf16, f32 acc)
        "b_stem": pad_vec(p["stem_b"]),
        "w_dw":   w_dw,                          # VPU operand, keep f32
        "b_dw":   pad_vec(p["dw_b"]),
        "w_pw":   w_pw.astype(jnp.bfloat16),     # MXU operand (bf16, f32 acc)
        "b_pw":   pad_vec(p["pw_b"]),
        "w_fc":   w_fc,                          # single-row matmul, keep f32
        "b_fc":   pad_vec(p["fc_b"]),
    }


# ---------------------------------------------------------------------------
# Model wrapper: layout transforms only (no HBM amplification) + pallas_call.
# ---------------------------------------------------------------------------
def grading_model_forward(x_nchw, kp, *, num_classes=3, lanes=128):
    # NCHW (PyTorch) -> NHWC (kernel layout)
    x = jnp.transpose(x_nchw, (0, 2, 3, 1)).astype(jnp.float32)
    B, H, W, Cin = x.shape
    assert H % 2 == 0 and W % 2 == 0, "even spatial dims required"

    # Pad (for conv pad=1) and space-to-depth by 2: same total bytes as input.
    xp = jnp.pad(x, ((0, 0), (1, 1), (1, 1), (0, 0)))
    Hs, Ws = (H + 2) // 2, (W + 2) // 2
    xs = xp.reshape(B, Hs, 2, Ws, 2, Cin).transpose(0, 1, 3, 2, 4, 5)
    xs = xs.reshape(B, Hs, Ws, 4 * Cin)
    Ho, Wo = H // 2, W // 2
    Ks = 4 * Cin

    out = pl.pallas_call(
        _grading_fused_kernel,
        out_shape=jax.ShapeDtypeStruct((B, 8, lanes), jnp.float32),
        grid=(B,),
        in_specs=[
            pl.BlockSpec((1, Hs, Ws, Ks), lambda b: (b, 0, 0, 0)),   # s2d image
            pl.BlockSpec((4, Ks, lanes), lambda b: (0, 0, 0)),       # stem w
            pl.BlockSpec((1, lanes), lambda b: (0, 0)),              # stem b
            pl.BlockSpec((9, lanes), lambda b: (0, 0)),              # dw w
            pl.BlockSpec((1, lanes), lambda b: (0, 0)),              # dw b
            pl.BlockSpec((lanes, lanes), lambda b: (0, 0)),          # pw w
            pl.BlockSpec((1, lanes), lambda b: (0, 0)),              # pw b
            pl.BlockSpec((lanes, lanes), lambda b: (0, 0)),          # fc w
            pl.BlockSpec((1, lanes), lambda b: (0, 0)),              # fc b
        ],
        out_specs=pl.BlockSpec((1, 8, lanes), lambda b: (b, 0, 0)),
        scratch_shapes=[pltpu.VMEM((Ho + 2, Wo + 2, lanes), jnp.float32)],
        compiler_params=pltpu.CompilerParams(
            dimension_semantics=("parallel",),   # batch axis -> both TCs on v7x
        ),
    )(xs, kp["w_stem"], kp["b_stem"], kp["w_dw"], kp["b_dw"],
      kp["w_pw"], kp["b_pw"], kp["w_fc"], kp["b_fc"])

    # Logits were written lane-padded / sublane-broadcast; slice to num_classes.
    return out[:, 0, :num_classes]


# ---------------------------------------------------------------------------
if __name__ == "__main__":
    key = jax.random.PRNGKey(0)
    k_x, k_p = jax.random.split(key)

    # Small NCHW image batch, 3 channels as the EfficientNet backbone expects.
    x = jax.random.normal(k_x, (2, 3, 16, 16), jnp.float32)
    raw_params = init_params(k_p, cin=3, c_stem=32, c_head=64, num_classes=3)
    packed_params = pack_params(raw_params, cin=3, lanes=128)

    fwd = jax.jit(functools.partial(grading_model_forward, num_classes=3))
    logits = fwd(x, packed_params)
    jax.block_until_ready(logits)

    assert logits.shape == (2, 3) and logits.dtype == jnp.float32
    print("KERNEL_OK")
</pallas_src>

<mosaic_0001>
module attributes {stable_mosaic.version = 11 : i64} {
  func.func @_grading_fused_kernel(%arg0: i32, %arg1: memref<1x9x9x12xf32, #tpu.memory_space<vmem>>, %arg2: memref<4x12x128xbf16, #tpu.memory_space<vmem>>, %arg3: memref<1x128xf32, #tpu.memory_space<vmem>>, %arg4: memref<9x128xf32, #tpu.memory_space<vmem>>, %arg5: memref<1x128xf32, #tpu.memory_space<vmem>>, %arg6: memref<128x128xbf16, #tpu.memory_space<vmem>>, %arg7: memref<1x128xf32, #tpu.memory_space<vmem>>, %arg8: memref<128x128xf32, #tpu.memory_space<vmem>>, %arg9: memref<1x128xf32, #tpu.memory_space<vmem>>, %arg10: memref<1x8x128xf32, #tpu.memory_space<vmem>>, %arg11: memref<10x10x128xf32, #tpu.memory_space<vmem>>) attributes {dimension_semantics = [#tpu.dimension_semantics<parallel>], iteration_bounds = array<i64: 2>, scalar_prefetch = 0 : i64, scratch_operands = 1 : i64, tpu.core_type = #tpu.core_type<tc>, window_params = [{transform_indices = @transform_0, window_bounds = array<i64: 1, 9, 9, 12>}, {pipeline_mode = #tpu.pipeline_mode<synchronous>, transform_indices = @transform_1, window_bounds = array<i64: 4, 12, 128>}, {pipeline_mode = #tpu.pipeline_mode<synchronous>, transform_indices = @transform_2, window_bounds = array<i64: 1, 128>}, {pipeline_mode = #tpu.pipeline_mode<synchronous>, transform_indices = @transform_3, window_bounds = array<i64: 9, 128>}, {pipeline_mode = #tpu.pipeline_mode<synchronous>, transform_indices = @transform_4, window_bounds = array<i64: 1, 128>}, {pipeline_mode = #tpu.pipeline_mode<synchronous>, transform_indices = @transform_5, window_bounds = array<i64: 128, 128>}, {pipeline_mode = #tpu.pipeline_mode<synchronous>, transform_indices = @transform_6, window_bounds = array<i64: 1, 128>}, {pipeline_mode = #tpu.pipeline_mode<synchronous>, transform_indices = @transform_7, window_bounds = array<i64: 128, 128>}, {pipeline_mode = #tpu.pipeline_mode<synchronous>, transform_indices = @transform_8, window_bounds = array<i64: 1, 128>}, {transform_indices = @transform_9, window_bounds = array<i64: 1, 8, 128>}]} {
    %cst = arith.constant 0.000000e+00 : f32
    %0 = vector.broadcast %cst : f32 to vector<64x128xf32>
    %c0 = arith.constant 0 : index
    %c0_0 = arith.constant 0 : index
    %c0_1 = arith.constant 0 : index
    %c0_2 = arith.constant 0 : index
    %1 = vector.load %arg1[%c0, %c0_0, %c0_1, %c0_2] : memref<1x9x9x12xf32, #tpu.memory_space<vmem>>, vector<1x8x8x12xf32>
    %2 = vector.shape_cast %1 : vector<1x8x8x12xf32> to vector<8x8x12xf32>
    %3 = vector.shape_cast %2 : vector<8x8x12xf32> to vector<64x12xf32>
    %4 = arith.truncf %3 : vector<64x12xf32> to vector<64x12xbf16>
    %c0_3 = arith.constant 0 : index
    %c0_4 = arith.constant 0 : index
    %c0_5 = arith.constant 0 : index
    %5 = vector.load %arg2[%c0_3, %c0_4, %c0_5] : memref<4x12x128xbf16, #tpu.memory_space<vmem>>, vector<1x12x128xbf16>
    %6 = vector.shape_cast %5 : vector<1x12x128xbf16> to vector<12x128xbf16>
    %cst_6 = arith.constant dense<0.000000e+00> : vector<64x128xf32>
    %7 = tpu.matmul %4, %6, %cst_6 {dimension_numbers = #tpu.dot_dimension_numbers<[1], [0], [0], [1], [0, 0, 1, 1], [], []>} : vector<64x12xbf16>, vector<12x128xbf16>, vector<64x128xf32> -> vector<64x128xf32>
    %8 = arith.addf %0, %7 : vector<64x128xf32>
    %c0_7 = arith.constant 0 : index
    %c0_8 = arith.constant 0 : index
    %c1 = arith.constant 1 : index
    %c0_9 = arith.constant 0 : index
    %9 = vector.load %arg1[%c0_7, %c0_8, %c1, %c0_9] : memref<1x9x9x12xf32, #tpu.memory_space<vmem>>, vector<1x8x8x12xf32>
    %10 = vector.shape_cast %9 : vector<1x8x8x12xf32> to vector<8x8x12xf32>
    %11 = vector.shape_cast %10 : vector<8x8x12xf32> to vector<64x12xf32>
    %12 = arith.truncf %11 : vector<64x12xf32> to vector<64x12xbf16>
    %c1_10 = arith.constant 1 : index
    %c0_11 = arith.constant 0 : index
    %c0_12 = arith.constant 0 : index
    %13 = vector.load %arg2[%c1_10, %c0_11, %c0_12] : memref<4x12x128xbf16, #tpu.memory_space<vmem>>, vector<1x12x128xbf16>
    %14 = vector.shape_cast %13 : vector<1x12x128xbf16> to vector<12x128xbf16>
    %cst_13 = arith.constant dense<0.000000e+00> : vector<64x128xf32>
    %15 = tpu.matmul %12, %14, %cst_13 {dimension_numbers = #tpu.dot_dimension_numbers<[1], [0], [0], [1], [0, 0, 1, 1], [], []>} : vector<64x12xbf16>, vector<12x128xbf16>, vector<64x128xf32> -> vector<64x128xf32>
    %16 = arith.addf %8, %15 : vector<64x128xf32>
    %c0_14 = arith.constant 0 : index
    %c1_15 = arith.constant 1 : index
    %c0_16 = arith.constant 0 : index
    %c0_17 = arith.constant 0 : index
    %17 = vector.load %arg1[%c0_14, %c1_15, %c0_16, %c0_17] : memref<1x9x9x12xf32, #tpu.memory_space<vmem>>, vector<1x8x8x12xf32>
    %18 = vector.shape_cast %17 : vector<1x8x8x12xf32> to vector<8x8x12xf32>
    %19 = vector.shape_cast %18 : vector<8x8x12xf32> to vector<64x12xf32>
    %20 = arith.truncf %19 : vector<64x12xf32> to vector<64x12xbf16>
    %c2 = arith.constant 2 : index
    %c0_18 = arith.constant 0 : index
    %c0_19 = arith.constant 0 : index
    %21 = vector.load %arg2[%c2, %c0_18, %c0_19] : memref<4x12x128xbf16, #tpu.memory_space<vmem>>, vector<1x12x128xbf16>
    %22 = vector.shape_cast %21 : vector<1x12x128xbf16> to vector<12x128xbf16>
    %cst_20 = arith.constant dense<0.000000e+00> : vector<64x128xf32>
    %23 = tpu.matmul %20, %22, %cst_20 {dimension_numbers = #tpu.dot_dimension_numbers<[1], [0], [0], [1], [0, 0, 1, 1], [], []>} : vector<64x12xbf16>, vector<12x128xbf16>, vector<64x128xf32> -> vector<64x128xf32>
    %24 = arith.addf %16, %23 : vector<64x128xf32>
    %c0_21 = arith.constant 0 : index
    %c1_22 = arith.constant 1 : index
    %c1_23 = arith.constant 1 : index
    %c0_24 = arith.constant 0 : index
    %25 = vector.load %arg1[%c0_21, %c1_22, %c1_23, %c0_24] : memref<1x9x9x12xf32, #tpu.memory_space<vmem>>, vector<1x8x8x12xf32>
    %26 = vector.shape_cast %25 : vector<1x8x8x12xf32> to vector<8x8x12xf32>
    %27 = vector.shape_cast %26 : vector<8x8x12xf32> to vector<64x12xf32>
    %28 = arith.truncf %27 : vector<64x12xf32> to vector<64x12xbf16>
    %c3 = arith.constant 3 : index
    %c0_25 = arith.constant 0 : index
    %c0_26 = arith.constant 0 : index
    %29 = vector.load %arg2[%c3, %c0_25, %c0_26] : memref<4x12x128xbf16, #tpu.memory_space<vmem>>, vector<1x12x128xbf16>
    %30 = vector.shape_cast %29 : vector<1x12x128xbf16> to vector<12x128xbf16>
    %cst_27 = arith.constant dense<0.000000e+00> : vector<64x128xf32>
    %31 = tpu.matmul %28, %30, %cst_27 {dimension_numbers = #tpu.dot_dimension_numbers<[1], [0], [0], [1], [0, 0, 1, 1], [], []>} : vector<64x12xbf16>, vector<12x128xbf16>, vector<64x128xf32> -> vector<64x128xf32>
    %32 = arith.addf %24, %31 : vector<64x128xf32>
    %c0_28 = arith.constant 0 : index
    %c0_29 = arith.constant 0 : index
    %33 = vector.load %arg3[%c0_28, %c0_29] : memref<1x128xf32, #tpu.memory_space<vmem>>, vector<1x128xf32>
    %34 = vector.broadcast %33 : vector<1x128xf32> to vector<64x128xf32>
    %35 = arith.addf %32, %34 : vector<64x128xf32>
    %36 = arith.negf %35 : vector<64x128xf32>
    %37 = math.exp %36 : vector<64x128xf32>
    %cst_30 = arith.constant 1.000000e+00 : f32
    %38 = vector.broadcast %cst_30 : f32 to vector<64x128xf32>
    %39 = arith.addf %38, %37 : vector<64x128xf32>
    %40 = arith.divf %38, %39 : vector<64x128xf32>
    %41 = arith.mulf %35, %40 : vector<64x128xf32>
    %cst_31 = arith.constant 0.000000e+00 : f32
    %42 = vector.broadcast %cst_31 : f32 to vector<10x10x128xf32>
    %c0_32 = arith.constant 0 : index
    %c0_33 = arith.constant 0 : index
    %c0_34 = arith.constant 0 : index
    %43 = vector.load %arg11[%c0_32, %c0_33, %c0_34] : memref<10x10x128xf32, #tpu.memory_space<vmem>>, vector<10x10x128xf32>
    tpu.vector_store %arg11[%c0_32, %c0_33, %c0_34], %42 {strides = array<i32>} : memref<10x10x128xf32, #tpu.memory_space<vmem>>, vector<10x10x128xf32>,
    %44 = vector.shape_cast %41 : vector<64x128xf32> to vector<8x8x128xf32>
    %c1_35 = arith.constant 1 : index
    %c1_36 = arith.constant 1 : index
    %c0_37 = arith.constant 0 : index
    %45 = vector.load %arg11[%c1_35, %c1_36, %c0_37] : memref<10x10x128xf32, #tpu.memory_space<vmem>>, vector<8x8x128xf32>
    tpu.vector_store %arg11[%c1_35, %c1_36, %c0_37], %44 {strides = array<i32>} : memref<10x10x128xf32, #tpu.memory_space<vmem>>, vector<8x8x128xf32>,
    %c0_38 = arith.constant 0 : index
    %c0_39 = arith.constant 0 : index
    %46 = vector.load %arg4[%c0_38, %c0_39] : memref<9x128xf32, #tpu.memory_space<vmem>>, vector<9x128xf32>
    %cst_40 = arith.constant 0.000000e+00 : f32
    %47 = vector.broadcast %cst_40 : f32 to vector<8x8x128xf32>
    %c0_41 = arith.constant 0 : index
    %c0_42 = arith.constant 0 : index
    %c0_43 = arith.constant 0 : index
    %48 = vector.load %arg11[%c0_41, %c0_42, %c0_43] : memref<10x10x128xf32, #tpu.memory_space<vmem>>, vector<8x8x128xf32>
    %49 = vector.extract_strided_slice %46 {offsets = [0, 0], sizes = [1, 128], strides = [1, 1]} : vector<9x128xf32> to vector<1x128xf32>
    %50 = vector.shape_cast %49 : vector<1x128xf32> to vector<128xf32>
    %51 = vector.shape_cast %50 : vector<128xf32> to vector<1x1x128xf32>
    %52 = vector.broadcast %51 : vector<1x1x128xf32> to vector<8x8x128xf32>
    %53 = arith.mulf %48, %52 : vector<8x8x128xf32>
    %54 = arith.addf %47, %53 : vector<8x8x128xf32>
    %c0_44 = arith.constant 0 : index
    %c1_45 = arith.constant 1 : index
    %c0_46 = arith.constant 0 : index
    %55 = vector.load %arg11[%c0_44, %c1_45, %c0_46] : memref<10x10x128xf32, #tpu.memory_space<vmem>>, vector<8x8x128xf32>
    %56 = vector.extract_strided_slice %46 {offsets = [1, 0], sizes = [1, 128], strides = [1, 1]} : vector<9x128xf32> to vector<1x128xf32>
    %57 = vector.shape_cast %56 : vector<1x128xf32> to vector<128xf32>
    %58 = vector.shape_cast %57 : vector<128xf32> to vector<1x1x128xf32>
    %59 = vector.broadcast %58 : vector<1x1x128xf32> to vector<8x8x128xf32>
    %60 = arith.mulf %55, %59 : vector<8x8x128xf32>
    %61 = arith.addf %54, %60 : vector<8x8x128xf32>
    %c0_47 = arith.constant 0 : index
    %c2_48 = arith.constant 2 : index
    %c0_49 = arith.constant 0 : index
    %62 = vector.load %arg11[%c0_47, %c2_48, %c0_49] : memref<10x10x128xf32, #tpu.memory_space<vmem>>, vector<8x8x128xf32>
    %63 = vector.extract_strided_slice %46 {offsets = [2, 0], sizes = [1, 128], strides = [1, 1]} : vector<9x128xf32> to vector<1x128xf32>
    %64 = vector.shape_cast %63 : vector<1x128xf32> to vector<128xf32>
    %65 = vector.shape_cast %64 : vector<128xf32> to vector<1x1x128xf32>
    %66 = vector.broadcast %65 : vector<1x1x128xf32> to vector<8x8x128xf32>
    %67 = arith.mulf %62, %66 : vector<8x8x128xf32>
    %68 = arith.addf %61, %67 : vector<8x8x128xf32>
    %c1_50 = arith.constant 1 : index
    %c0_51 = arith.constant 0 : index
    %c0_52 = arith.constant 0 : index
    %69 = vector.load %arg11[%c1_50, %c0_51, %c0_52] : memref<10x10x128xf32, #tpu.memory_space<vmem>>, vector<8x8x128xf32>
    %70 = vector.extract_strided_slice %46 {offsets = [3, 0], sizes = [1, 128], strides = [1, 1]} : vector<9x128xf32> to vector<1x128xf32>
    %71 = vector.shape_cast %70 : vector<1x128xf32> to vector<128xf32>
    %72 = vector.shape_cast %71 : vector<128xf32> to vector<1x1x128xf32>
    %73 = vector.broadcast %72 : vector<1x1x128xf32> to vector<8x8x128xf32>
    %74 = arith.mulf %69, %73 : vector<8x8x128xf32>
    %75 = arith.addf %68, %74 : vector<8x8x128xf32>
    %c1_53 = arith.constant 1 : index
    %c1_54 = arith.constant 1 : index
    %c0_55 = arith.constant 0 : index
    %76 = vector.load %arg11[%c1_53, %c1_54, %c0_55] : memref<10x10x128xf32, #tpu.memory_space<vmem>>, vector<8x8x128xf32>
    %77 = vector.extract_strided_slice %46 {offsets = [4, 0], sizes = [1, 128], strides = [1, 1]} : vector<9x128xf32> to vector<1x128xf32>
    %78 = vector.shape_cast %77 : vector<1x128xf32> to vector<128xf32>
    %79 = vector.shape_cast %78 : vector<128xf32> to vector<1x1x128xf32>
    %80 = vector.broadcast %79 : vector<1x1x128xf32> to vector<8x8x128xf32>
    %81 = arith.mulf %76, %80 : vector<8x8x128xf32>
    %82 = arith.addf %75, %81 : vector<8x8x128xf32>
    %c1_56 = arith.constant 1 : index
    %c2_57 = arith.constant 2 : index
    %c0_58 = arith.constant 0 : index
    %83 = vector.load %arg11[%c1_56, %c2_57, %c0_58] : memref<10x10x128xf32, #tpu.memory_space<vmem>>, vector<8x8x128xf32>
    %84 = vector.extract_strided_slice %46 {offsets = [5, 0], sizes = [1, 128], strides = [1, 1]} : vector<9x128xf32> to vector<1x128xf32>
    %85 = vector.shape_cast %84 : vector<1x128xf32> to vector<128xf32>
    %86 = vector.shape_cast %85 : vector<128xf32> to vector<1x1x128xf32>
    %87 = vector.broadcast %86 : vector<1x1x128xf32> to vector<8x8x128xf32>
    %88 = arith.mulf %83, %87 : vector<8x8x128xf32>
    %89 = arith.addf %82, %88 : vector<8x8x128xf32>
    %c2_59 = arith.constant 2 : index
    %c0_60 = arith.constant 0 : index
    %c0_61 = arith.constant 0 : index
    %90 = vector.load %arg11[%c2_59, %c0_60, %c0_61] : memref<10x10x128xf32, #tpu.memory_space<vmem>>, vector<8x8x128xf32>
    %91 = vector.extract_strided_slice %46 {offsets = [6, 0], sizes = [1, 128], strides = [1, 1]} : vector<9x128xf32> to vector<1x128xf32>
    %92 = vector.shape_cast %91 : vector<1x128xf32> to vector<128xf32>
    %93 = vector.shape_cast %92 : vector<128xf32> to vector<1x1x128xf32>
    %94 = vector.broadcast %93 : vector<1x1x128xf32> to vector<8x8x128xf32>
    %95 = arith.mulf %90, %94 : vector<8x8x128xf32>
    %96 = arith.addf %89, %95 : vector<8x8x128xf32>
    %c2_62 = arith.constant 2 : index
    %c1_63 = arith.constant 1 : index
    %c0_64 = arith.constant 0 : index
    %97 = vector.load %arg11[%c2_62, %c1_63, %c0_64] : memref<10x10x128xf32, #tpu.memory_space<vmem>>, vector<8x8x128xf32>
    %98 = vector.extract_strided_slice %46 {offsets = [7, 0], sizes = [1, 128], strides = [1, 1]} : vector<9x128xf32> to vector<1x128xf32>
    %99 = vector.shape_cast %98 : vector<1x128xf32> to vector<128xf32>
    %100 = vector.shape_cast %99 : vector<128xf32> to vector<1x1x128xf32>
    %101 = vector.broadcast %100 : vector<1x1x128xf32> to vector<8x8x128xf32>
    %102 = arith.mulf %97, %101 : vector<8x8x128xf32>
    %103 = arith.addf %96, %102 : vector<8x8x128xf32>
    %c2_65 = arith.constant 2 : index
    %c2_66 = arith.constant 2 : index
    %c0_67 = arith.constant 0 : index
    %104 = vector.load %arg11[%c2_65, %c2_66, %c0_67] : memref<10x10x128xf32, #tpu.memory_space<vmem>>, vector<8x8x128xf32>
    %105 = vector.extract_strided_slice %46 {offsets = [8, 0], sizes = [1, 128], strides = [1, 1]} : vector<9x128xf32> to vector<1x128xf32>
    %106 = vector.shape_cast %105 : vector<1x128xf32> to vector<128xf32>
    %107 = vector.shape_cast %106 : vector<128xf32> to vector<1x1x128xf32>
    %108 = vector.broadcast %107 : vector<1x1x128xf32> to vector<8x8x128xf32>
    %109 = arith.mulf %104, %108 : vector<8x8x128xf32>
    %110 = arith.addf %103, %109 : vector<8x8x128xf32>
    %c0_68 = arith.constant 0 : index
    %c0_69 = arith.constant 0 : index
    %111 = vector.load %arg5[%c0_68, %c0_69] : memref<1x128xf32, #tpu.memory_space<vmem>>, vector<1x128xf32>
    %112 = vector.shape_cast %111 : vector<1x128xf32> to vector<128xf32>
    %113 = vector.shape_cast %112 : vector<128xf32> to vector<1x1x128xf32>
    %114 = vector.broadcast %113 : vector<1x1x128xf32> to vector<8x8x128xf32>
    %115 = arith.addf %110, %114 : vector<8x8x128xf32>
    %116 = arith.negf %115 : vector<8x8x128xf32>
    %117 = math.exp %116 : vector<8x8x128xf32>
    %cst_70 = arith.constant 1.000000e+00 : f32
    %118 = vector.broadcast %cst_70 : f32 to vector<8x8x128xf32>
    %119 = arith.addf %118, %117 : vector<8x8x128xf32>
    %120 = arith.divf %118, %119 : vector<8x8x128xf32>
    %121 = arith.mulf %115, %120 : vector<8x8x128xf32>
    %122 = vector.shape_cast %121 : vector<8x8x128xf32> to vector<64x128xf32>
    %123 = arith.truncf %122 : vector<64x128xf32> to vector<64x128xbf16>
    %c0_71 = arith.constant 0 : index
    %c0_72 = arith.constant 0 : index
    %124 = vector.load %arg6[%c0_71, %c0_72] : memref<128x128xbf16, #tpu.memory_space<vmem>>, vector<128x128xbf16>
    %cst_73 = arith.constant dense<0.000000e+00> : vector<64x128xf32>
    %125 = tpu.matmul %123, %124, %cst_73 {dimension_numbers = #tpu.dot_dimension_numbers<[1], [0], [0], [1], [0, 0, 1, 1], [], []>} : vector<64x128xbf16>, vector<128x128xbf16>, vector<64x128xf32> -> vector<64x128xf32>
    %c0_74 = arith.constant 0 : index
    %c0_75 = arith.constant 0 : index
    %126 = vector.load %arg7[%c0_74, %c0_75] : memref<1x128xf32, #tpu.memory_space<vmem>>, vector<1x128xf32>
    %127 = vector.broadcast %126 : vector<1x128xf32> to vector<64x128xf32>
    %128 = arith.addf %125, %127 : vector<64x128xf32>
    %129 = arith.negf %128 : vector<64x128xf32>
    %130 = math.exp %129 : vector<64x128xf32>
    %cst_76 = arith.constant 1.000000e+00 : f32
    %131 = vector.broadcast %cst_76 : f32 to vector<64x128xf32>
    %132 = arith.addf %131, %130 : vector<64x128xf32>
    %133 = arith.divf %131, %132 : vector<64x128xf32>
    %134 = arith.mulf %128, %133 : vector<64x128xf32>
    %cst_77 = arith.constant dense<0.000000e+00> : vector<128xf32>
    %135 = vector.multi_reduction <add>, %134, %cst_77 [0] : vector<64x128xf32> to vector<128xf32>
    %136 = vector.shape_cast %135 : vector<128xf32> to vector<1x128xf32>
    %cst_78 = arith.constant 1.562500e-02 : f32
    %137 = vector.broadcast %cst_78 : f32 to vector<1x128xf32>
    %138 = arith.mulf %136, %137 : vector<1x128xf32>
    %c0_79 = arith.constant 0 : index
    %c0_80 = arith.constant 0 : index
    %139 = vector.load %arg8[%c0_79, %c0_80] : memref<128x128xf32, #tpu.memory_space<vmem>>, vector<128x128xf32>
    %cst_81 = arith.constant dense<0.000000e+00> : vector<1x128xf32>
    %140 = tpu.matmul %138, %139, %cst_81 {dimension_numbers = #tpu.dot_dimension_numbers<[1], [0], [0], [1], [0, 0, 1, 1], [], []>} : vector<1x128xf32>, vector<128x128xf32>, vector<1x128xf32> -> vector<1x128xf32>
    %c0_82 = arith.constant 0 : index
    %c0_83 = arith.constant 0 : index
    %141 = vector.load %arg9[%c0_82, %c0_83] : memref<1x128xf32, #tpu.memory_space<vmem>>, vector<1x128xf32>
    %142 = arith.addf %140, %141 : vector<1x128xf32>
    %143 = vector.shape_cast %142 : vector<1x128xf32> to vector<1x1x128xf32>
    %144 = vector.broadcast %143 : vector<1x1x128xf32> to vector<1x8x128xf32>
    %c0_84 = arith.constant 0 : index
    %c0_85 = arith.constant 0 : index
    %c0_86 = arith.constant 0 : index
    %145 = vector.load %arg10[%c0_84, %c0_85, %c0_86] : memref<1x8x128xf32, #tpu.memory_space<vmem>>, vector<1x8x128xf32>
    tpu.vector_store %arg10[%c0_84, %c0_85, %c0_86], %144 {strides = array<i32>} : memref<1x8x128xf32, #tpu.memory_space<vmem>>, vector<1x8x128xf32>,
    return
  }
  func.func @transform_0(%arg0: i32) -> (i32, i32, i32, i32) {
    %c0_i32 = arith.constant 0 : i32
    %c0_i32_0 = arith.constant 0 : i32
    %c0_i32_1 = arith.constant 0 : i32
    %c0_i32_2 = arith.constant 0 : i32
    return %arg0, %c0_i32, %c0_i32_0, %c0_i32_1 : i32, i32, i32, i32
  }
  func.func @transform_1(%arg0: i32) -> (i32, i32, i32) {
    %c0_i32 = arith.constant 0 : i32
    %c0_i32_0 = arith.constant 0 : i32
    %c0_i32_1 = arith.constant 0 : i32
    %c0_i32_2 = arith.constant 0 : i32
    return %c0_i32, %c0_i32_0, %c0_i32_1 : i32, i32, i32
  }
  func.func @transform_2(%arg0: i32) -> (i32, i32) {
    %c0_i32 = arith.constant 0 : i32
    %c0_i32_0 = arith.constant 0 : i32
    %c0_i32_1 = arith.constant 0 : i32
    return %c0_i32, %c0_i32_0 : i32, i32
  }
  func.func @transform_3(%arg0: i32) -> (i32, i32) {
    %c0_i32 = arith.constant 0 : i32
    %c0_i32_0 = arith.constant 0 : i32
    %c0_i32_1 = arith.constant 0 : i32
    return %c0_i32, %c0_i32_0 : i32, i32
  }
  func.func @transform_4(%arg0: i32) -> (i32, i32) {
    %c0_i32 = arith.constant 0 : i32
    %c0_i32_0 = arith.constant 0 : i32
    %c0_i32_1 = arith.constant 0 : i32
    return %c0_i32, %c0_i32_0 : i32, i32
  }
  func.func @transform_5(%arg0: i32) -> (i32, i32) {
    %c0_i32 = arith.constant 0 : i32
    %c0_i32_0 = arith.constant 0 : i32
    %c0_i32_1 = arith.constant 0 : i32
    return %c0_i32, %c0_i32_0 : i32, i32
  }
  func.func @transform_6(%arg0: i32) -> (i32, i32) {
    %c0_i32 = arith.constant 0 : i32
    %c0_i32_0 = arith.constant 0 : i32
    %c0_i32_1 = arith.constant 0 : i32
    return %c0_i32, %c0_i32_0 : i32, i32
  }
  func.func @transform_7(%arg0: i32) -> (i32, i32) {
    %c0_i32 = arith.constant 0 : i32
    %c0_i32_0 = arith.constant 0 : i32
    %c0_i32_1 = arith.constant 0 : i32
    return %c0_i32, %c0_i32_0 : i32, i32
  }
  func.func @transform_8(%arg0: i32) -> (i32, i32) {
    %c0_i32 = arith.constant 0 : i32
    %c0_i32_0 = arith.constant 0 : i32
    %c0_i32_1 = arith.constant 0 : i32
    return %c0_i32, %c0_i32_0 : i32, i32
  }
  func.func @transform_9(%arg0: i32) -> (i32, i32, i32) {
    %c0_i32 = arith.constant 0 : i32
    %c0_i32_0 = arith.constant 0 : i32
    %c0_i32_1 = arith.constant 0 : i32
    return %arg0, %c0_i32, %c0_i32_0 : i32, i32, i32
  }
}

</mosaic_0001>

<llo_original>
// kernel: grading_model_forward.1
$region0: #{grading_model_forward.1}
  #allocation0 [shape = 'u32[]', space=smem, size = 0x4, offset = 0x4, fixed_abs, tag = 'smem constant byte address 0x4 - core index']
  #allocation1 [shape = 'u32[144,128]{1,0:T(1,128)}', space=vmem, size = 0x12000, scoped, tag = 'internal scratch']
  #allocation2 [shape = 'f32[10,10,128]{2,1,0:T(8,128)}', space=vmem, size = 0x14000, scoped, tag = 'scratch operand']
  %s0 = inlined_call_operand.vmem [shape: f32[2,9,9,12], index: 0, kind: input, shape index: {}]
  %s1 = inlined_call_operand.vmem [shape: bf16[4,12,128], index: 1, kind: input, shape index: {}]
  %s2 = inlined_call_operand.vmem [shape: f32[1,128], index: 2, kind: input, shape index: {}]
  %s3 = inlined_call_operand.vmem [shape: f32[9,128], index: 3, kind: input, shape index: {}]
  %s4 = inlined_call_operand.vmem [shape: f32[1,128], index: 4, kind: input, shape index: {}]
  %s5 = inlined_call_operand.vmem [shape: bf16[128,128], index: 5, kind: input, shape index: {}]
  %s6 = inlined_call_operand.vmem [shape: f32[1,128], index: 6, kind: input, shape index: {}]
  %s7 = inlined_call_operand.vmem [shape: f32[128,128], index: 7, kind: input, shape index: {}]
  %s8 = inlined_call_operand.vmem [shape: f32[1,128], index: 8, kind: input, shape index: {}]
  %s9 = inlined_call_operand.vmem [shape: f32[2,8,128], index: 9, kind: output, shape index: {}]
  %s10 = sld [smem:[#allocation0]]
  $region69: #{grading_model_forward.1} parent=0
    _
  %s12 = ssub.s32 1, %s10
  %s13 = scalar_select 0, %s12, %s10
  loop: start=0, step=1, limit=4
  $region2: #{grading_model_forward.1} parent=0 // loop_pre_header
    _
  $region3: #{grading_model_forward.1} parent=0 // loop_header
    %s15 = sphi 0, %s19
    %p16 = scmp.ge.s32.totalorder %s15, 4
    %s25 = sphi 0, %s27
    %s28 = sphi 0, %s25
    %s29 = sphi 0, %s28
    %s45 = sphi 0, %s29
    %s49 = sphi 0, %s49
    %s51 = sphi 0, %s49
    %s52 = sphi 0, %s51
    %s66 = sphi 0, %s52
    %s70 = sphi 0, %s70
    %s72 = sphi 0, %s70
    %s73 = sphi 0, %s72
    %s87 = sphi 0, %s73
    %s91 = sphi 0, %s91
    %s93 = sphi 0, %s91
    %s94 = sphi 0, %s93
    %s108 = sphi 0, %s94
    %s112 = sphi 0, %s112
    %s114 = sphi 0, %s112
    %s115 = sphi 0, %s114
    %s129 = sphi 0, %s115
    %s133 = sphi 0, %s133
    %s135 = sphi 0, %s133
    %s136 = sphi 0, %s135
    %s150 = sphi 0, %s136
    %s154 = sphi 0, %s154
    %s156 = sphi 0, %s154
    %s157 = sphi 0, %s156
    %s171 = sphi 0, %s157
    %s175 = sphi 0, %s175
    %s177 = sphi 0, %s175
    %s178 = sphi 0, %s177
    %s192 = sphi 0, %s178
    %s196 = sphi 0, %s196
    %s198 = sphi 0, %s196
    %s199 = sphi 0, %s198
    %s213 = sphi 0, %s199
    %s219 = sphi 0, %s221
    %s222 = sphi 0, %s219
    %s223 = sphi 0, %s222
    %s239 = sphi 0, %s223
  $region4: #{grading_model_forward.1} parent=0 // loop_header_branch
    %18 = sbr.rel (%p16) target = $region8
  $region5: #{grading_model_forward.1} parent=0 // loop_body
    %s20 = ssub.s32 %s15, 1
    %s21 = ssub.s32 %s15, 2
    %s22 = sadd.s32 %s15, 1
    %s23 = ssub.s32 %s15, %s22
    %p24 = scmp.eq.s32.totalorder %s23, 0
    %s26 = sadd.s32 %s25, 1
    %s27 = scalar_select %p24, %s25, %s26
    %p30 = pneg %p24
    %p31 = scmp.eq.s32.totalorder %s15, 1
    %p32 = por %p30, %p31
    %p33 = scmp.ne.s32.totalorder %s25, %s28
    %p34 = scmp.eq.s32.totalorder %s15, 0
    %p35 = por %p33, %p34
    %p36 = scmp.ne.s32.totalorder %s25, %s28
    %p37 = scmp.eq.s32.totalorder %s20, 1
    %p38 = por %p36, %p37
    %p39 = scmp.ne.s32.totalorder %s28, %s29
    %p40 = scmp.eq.s32.totalorder %s20, 0
    %p41 = por %p39, %p40
    %p42 = scmp.ne.s32.totalorder %s28, %s29
    %p43 = scmp.eq.s32.totalorder %s21, 1
    %p44 = por %p42, %p43
    %p46 = scmp.ne.s32.totalorder %s29, %s45
    %p47 = scmp.eq.s32.totalorder %s21, 0
    %p48 = por %p46, %p47
    %s50 = sadd.s32 %s49, 1
    %p53 = scmp.eq.s32.totalorder %s15, 1
    %p54 = scmp.ne.s32.totalorder %s49, %s51
    %p55 = scmp.eq.s32.totalorder %s15, 0
    %p56 = por %p54, %p55
    %p57 = scmp.ne.s32.totalorder %s49, %s51
    %p58 = scmp.eq.s32.totalorder %s20, 1
    %p59 = por %p57, %p58
    %p60 = scmp.ne.s32.totalorder %s51, %s52
    %p61 = scmp.eq.s32.totalorder %s20, 0
    %p62 = por %p60, %p61
    %p63 = scmp.ne.s32.totalorder %s51, %s52
    %p64 = scmp.eq.s32.totalorder %s21, 1
    %p65 = por %p63, %p64
    %p67 = scmp.ne.s32.totalorder %s52, %s66
    %p68 = scmp.eq.s32.totalorder %s21, 0
    %p69 = por %p67, %p68
    %s71 = sadd.s32 %s70, 1
    %p74 = scmp.eq.s32.totalorder %s15, 1
    %p75 = scmp.ne.s32.totalorder %s70, %s72
    %p76 = scmp.eq.s32.totalorder %s15, 0
    %p77 = por %p75, %p76
    %p78 = scmp.ne.s32.totalorder %s70, %s72
    %p79 = scmp.eq.s32.totalorder %s20, 1
    %p80 = por %p78, %p79
    %p81 = scmp.ne.s32.totalorder %s72, %s73
    %p82 = scmp.eq.s32.totalorder %s20, 0
    %p83 = por %p81, %p82
    %p84 = scmp.ne.s32.totalorder %s72, %s73
    %p85 = scmp.eq.s32.totalorder %s21, 1
    %p86 = por %p84, %p85
    %p88 = scmp.ne.s32.totalorder %s73, %s87
    %p89 = scmp.eq.s32.totalorder %s21, 0
    %p90 = por %p88, %p89
    %s92 = sadd.s32 %s91, 1
    %p95 = scmp.eq.s32.totalorder %s15, 1
    %p96 = scmp.ne.s32.totalorder %s91, %s93
    %p97 = scmp.eq.s32.totalorder %s15, 0
    %p98 = por %p96, %p97
    %p99 = scmp.ne.s32.totalorder %s91, %s93
    %p100 = scmp.eq.s32.totalorder %s20, 1
    %p101 = por %p99, %p100
    %p102 = scmp.ne.s32.totalorder %s93, %s94
    %p103 = scmp.eq.s32.totalorder %s20, 0
    %p104 = por %p102, %p103
    %p105 = scmp.ne.s32.totalorder %s93, %s94
    %p106 = scmp.eq.s32.totalorder %s21, 1
    %p107 = por %p105, %p106
    %p109 = scmp.ne.s32.totalorder %s94, %s108
    %p110 = scmp.eq.s32.totalorder %s21, 0
    %p111 = por %p109, %p110
    %s113 = sadd.s32 %s112, 1
    %p116 = scmp.eq.s32.totalorder %s15, 1
    %p117 = scmp.ne.s32.totalorder %s112, %s114
    %p118 = scmp.eq.s32.totalorder %s15, 0
    %p119 = por %p117, %p118
    %p120 = scmp.ne.s32.totalorder %s112, %s114
    %p121 = scmp.eq.s32.totalorder %s20, 1
    %p122 = por %p120, %p121
    %p123 = scmp.ne.s32.totalorder %s114, %s115
    %p124 = scmp.eq.s32.totalorder %s20, 0
    %p125 = por %p123, %p124
    %p126 = scmp.ne.s32.totalorder %s114, %s115
    %p127 = scmp.eq.s32.totalorder %s21, 1
    %p128 = por %p126, %p127
    %p130 = scmp.ne.s32.totalorder %s115, %s129
    %p131 = scmp.eq.s32.totalorder %s21, 0
    %p132 = por %p130, %p131
    %s134 = sadd.s32 %s133, 1
    %p137 = scmp.eq.s32.totalorder %s15, 1
    %p138 = scmp.ne.s32.totalorder %s133, %s135
    %p139 = scmp.eq.s32.totalorder %s15, 0
    %p140 = por %p138, %p139
    %p141 = scmp.ne.s32.totalorder %s133, %s135
    %p142 = scmp.eq.s32.totalorder %s20, 1
    %p143 = por %p141, %p142
    %p144 = scmp.ne.s32.totalorder %s135, %s136
    %p145 = scmp.eq.s32.totalorder %s20, 0
    %p146 = por %p144, %p145
    %p147 = scmp.ne.s32.totalorder %s135, %s136
    %p148 = scmp.eq.s32.totalorder %s21, 1
    %p149 = por %p147, %p148
    %p151 = scmp.ne.s32.totalorder %s136, %s150
    %p152 = scmp.eq.s32.totalorder %s21, 0
    %p153 = por %p151, %p152
    %s155 = sadd.s32 %s154, 1
    %p158 = scmp.eq.s32.totalorder %s15, 1
    %p159 = scmp.ne.s32.totalorder %s154, %s156
    %p160 = scmp.eq.s32.totalorder %s15, 0
    %p161 = por %p159, %p160
    %p162 = scmp.ne.s32.totalorder %s154, %s156
    %p163 = scmp.eq.s32.totalorder %s20, 1
    %p164 = por %p162, %p163
    %p165 = scmp.ne.s32.totalorder %s156, %s157
    %p166 = scmp.eq.s32.totalorder %s20, 0
    %p167 = por %p165, %p166
    %p168 = scmp.ne.s32.totalorder %s156, %s157
    %p169 = scmp.eq.s32.totalorder %s21, 1
    %p170 = por %p168, %p169
    %p172 = scmp.ne.s32.totalorder %s157, %s171
    %p173 = scmp.eq.s32.totalorder %s21, 0
    %p174 = por %p172, %p173
    %s176 = sadd.s32 %s175, 1
    %p179 = scmp.eq.s32.totalorder %s15, 1
    %p180 = scmp.ne.s32.totalorder %s175, %s177
    %p181 = scmp.eq.s32.totalorder %s15, 0
    %p182 = por %p180, %p181
    %p183 = scmp.ne.s32.totalorder %s175, %s177
    %p184 = scmp.eq.s32.totalorder %s20, 1
    %p185 = por %p183, %p184
    %p186 = scmp.ne.s32.totalorder %s177, %s178
    %p187 = scmp.eq.s32.totalorder %s20, 0
    %p188 = por %p186, %p187
    %p189 = scmp.ne.s32.totalorder %s177, %s178
    %p190 = scmp.eq.s32.totalorder %s21, 1
    %p191 = por %p189, %p190
    %p193 = scmp.ne.s32.totalorder %s178, %s192
    %p194 = scmp.eq.s32.totalorder %s21, 0
    %p195 = por %p193, %p194
    %s197 = sadd.s32 %s196, 1
    %p200 = scmp.eq.s32.totalorder %s15, 1
    %p201 = scmp.ne.s32.totalorder %s196, %s198
    %p202 = scmp.eq.s32.totalorder %s15, 0
    %p203 = por %p201, %p202
    %p204 = scmp.ne.s32.totalorder %s196, %s198
    %p205 = scmp.eq.s32.totalorder %s20, 1
    %p206 = por %p204, %p205
    %p207 = scmp.ne.s32.totalorder %s198, %s199
    %p208 = scmp.eq.s32.totalorder %s20, 0
    %p209 = por %p207, %p208
    %p210 = scmp.ne.s32.totalorder %s198, %s199
    %p211 = scmp.eq.s32.totalorder %s21, 1
    %p212 = por %p210, %p211
    %p214 = scmp.ne.s32.totalorder %s199, %s213
    %p215 = scmp.eq.s32.totalorder %s21, 0
    %p216 = por %p214, %p215
    %s217 = ssub.s32 %s15, %s22
    %p218 = scmp.eq.s32.totalorder %s217, 0
    %s220 = sadd.s32 %s219, 1
    %s221 = scalar_select %p218, %s219, %s220
    %p224 = pneg %p218
    %p225 = scmp.eq.s32.totalorder %s15, 1
    %p226 = por %p224, %p225
    %p227 = scmp.ne.s32.totalorder %s219, %s222
    %p228 = scmp.eq.s32.totalorder %s15, 0
    %p229 = por %p227, %p228
    %p230 = scmp.ne.s32.totalorder %s219, %s222
    %p231 = scmp.eq.s32.totalorder %s20, 1
    %p232 = por %p230, %p231
    %p233 = scmp.ne.s32.totalorder %s222, %s223
    %p234 = scmp.eq.s32.totalorder %s20, 0
    %p235 = por %p233, %p234
    %p236 = scmp.ne.s32.totalorder %s222, %s223
    %p237 = scmp.eq.s32.totalorder %s21, 1
    %p238 = por %p236, %p237
    %p240 = scmp.ne.s32.totalorder %s223, %s239
    %p241 = scmp.eq.s32.totalorder %s21, 0
    %p242 = por %p240, %p241
    %p243 = scmp.le.s32.totalorder 1, %s15
    %p244 = scmp.lt.s32.totalorder %s15, 3
    %p245 = pnand %p243, %p244
    %p246 = pneg %p245
    // Predicated region
    $region9: #{grading_model_forward.1} parent=5 // pred_check
      _
    $region10: #{grading_model_forward.1} parent=5 // pred_check_branch
      %248 = sbr.rel (%p245) target = $region12
    $region11: #{grading_model_forward.1} parent=5 // pred_region
      %s249 = ssub.s32 %s15, 1
      // Predicated region
      $region13: #{grading_model_forward.1} parent=11 // pred_check
        %p250 = pneg %p62
      $region14: #{grading_model_forward.1} parent=11 // pred_check_branch
        %252 = sbr.rel (%p250) target = $region16
      $region15: #{grading_model_forward.1} parent=11 // pred_region
        _
      $region16: #{grading_model_forward.1} parent=11 // pred_fallthru
        _
      // Predicated region
      $region17: #{grading_model_forward.1} parent=11 // pred_check
        %p253 = pneg %p83
      $region18: #{grading_model_forward.1} parent=11 // pred_check_branch
        %255 = sbr.rel (%p253) target = $region20
      $region19: #{grading_model_forward.1} parent=11 // pred_region
        _
      $region20: #{grading_model_forward.1} parent=11 // pred_fallthru
        _
      // Predicated region
      $region21: #{grading_model_forward.1} parent=11 // pred_check
        %p256 = pneg %p104
      $region22: #{grading_model_forward.1} parent=11 // pred_check_branch
        %258 = sbr.rel (%p256) target = $region24
      $region23: #{grading_model_forward.1} parent=11 // pred_region
        _
      $region24: #{grading_model_forward.1} parent=11 // pred_fallthru
        _
      // Predicated region
      $region25: #{grading_model_forward.1} parent=11 // pred_check
        %p259 = pneg %p125
      $region26: #{grading_model_forward.1} parent=11 // pred_check_branch
        %261 = sbr.rel (%p259) target = $region28
      $region27: #{grading_model_forward.1} parent=11 // pred_region
        _
      $region28: #{grading_model_forward.1} parent=11 // pred_fallthru
        _
      // Predicated region
      $region29: #{grading_model_forward.1} parent=11 // pred_check
        %p262 = pneg %p146
      $region30: #{grading_model_forward.1} parent=11 // pred_check_branch
        %264 = sbr.rel (%p262) target = $region32
      $region31: #{grading_model_forward.1} parent=11 // pred_region
        _
      $region32: #{grading_model_forward.1} parent=11 // pred_fallthru
        _
      // Predicated region
      $region33: #{grading_model_forward.1} parent=11 // pred_check
        %p265 = pneg %p167
      $region34: #{grading_model_forward.1} parent=11 // pred_check_branch
        %267 = sbr.rel (%p265) target = $region36
      $region35: #{grading_model_forward.1} parent=11 // pred_region
        _
      $region36: #{grading_model_forward.1} parent=11 // pred_fallthru
        _
      // Predicated region
      $region37: #{grading_model_forward.1} parent=11 // pred_check
        %p268 = pneg %p188
      $region38: #{grading_model_forward.1} parent=11 // pred_check_branch
        %270 = sbr.rel (%p268) target = $region40
      $region39: #{grading_model_forward.1} parent=11 // pred_region
        _
      $region40: #{grading_model_forward.1} parent=11 // pred_fallthru
        _
      // Predicated region
      $region41: #{grading_model_forward.1} parent=11 // pred_check
        %p271 = pneg %p209
      $region42: #{grading_model_forward.1} parent=11 // pred_check_branch
        %273 = sbr.rel (%p271) target = $region44
      $region43: #{grading_model_forward.1} parent=11 // pred_region
        _
      $region44: #{grading_model_forward.1} parent=11 // pred_fallthru
        _
    $region12: #{grading_model_forward.1} parent=5 // pred_fallthru
      _
    %p274 = scmp.lt.s32.totalorder %s15, 2
    // Predicated region
    $region45: #{grading_model_forward.1} parent=5 // pred_check
      %p275 = pneg %p274
    $region46: #{grading_model_forward.1} parent=5 // pred_check_branch
      %277 = sbr.rel (%p275) target = $region48
    $region47: #{grading_model_forward.1} parent=5 // pred_region
      // Predicated region
      $region49: #{grading_model_forward.1} parent=47 // pred_check
        %p278 = pneg %p35
      $region50: #{grading_model_forward.1} parent=47 // pred_check_branch
        %280 = sbr.rel (%p278) target = $region52
      $region51: #{grading_model_forward.1} parent=47 // pred_region
        %p281 = scmp.lt.s32.totalorder %s15, 1
        %s282 = scalar_select %p281, %s15, 1
        %s283 = smul.addr %s282, 18
        %s284 = smul.addr %s283, 8
        %s285 = scalar_lea.vmem %s0, %s284
      $region52: #{grading_model_forward.1} parent=47 // pred_fallthru
        _
    $region48: #{grading_model_forward.1} parent=5 // pred_fallthru
      _
    %p286 = scmp.le.s32.totalorder 1, %s15
    %p287 = scmp.lt.s32.totalorder %s15, 3
    %p288 = pnand %p286, %p287
    %p289 = pneg %p288
    // Predicated region
    $region53: #{grading_model_forward.1} parent=5 // pred_check
      _
    $region54: #{grading_model_forward.1} parent=5 // pred_check_branch
      %291 = sbr.rel (%p288) target = $region56
    $region55: #{grading_model_forward.1} parent=5 // pred_region
      %s292 = ssub.s32 %s15, 1
      %p293 = scmp.lt.s32.totalorder %s20, 1
      %s294 = scalar_select %p293, %s20, 1
      %s295 = smul.addr %s294, 18
      %s296 = smul.addr %s295, 8
      %s297 = scalar_lea.vmem %s0, %s296
      %p298 = pneg %p41
      %p299 = pneg %p38
      %p300 = pneg %p62
      %p301 = pneg %p59
      %p302 = pneg %p83
      %p303 = pneg %p80
      %p304 = pneg %p104
      %p305 = pneg %p101
      %p306 = pneg %p125
      %p307 = pneg %p122
      %p308 = pneg %p146
      %p309 = pneg %p143
      %p310 = pneg %p167
      %p311 = pneg %p164
      %p312 = pneg %p188
      %p313 = pneg %p185
      %p314 = pneg %p209
      %p315 = pneg %p206
      %p316 = pneg %p235
      %p317 = pneg %p232
      %p318 = scmp.lt.s32.totalorder %s20, 1
      %s319 = scalar_select %p318, %s20, 1
      %s320 = smul.addr %s319, 8
      %s321 = scalar_lea.vmem %s9, %s320
      %p322 = scmp.lt.s32.totalorder %s20, 1
      %s323 = scalar_select %p322, %s20, 1
      %s324 = smul.addr %s323, 18
      %s325 = smul.addr %s324, 8
      %s326 = scalar_lea.vmem %s0, %s325
      %p327 = scmp.lt.s32.totalorder %s20, 1
      %s328 = scalar_select %p327, %s20, 1
      %s329 = smul.addr %s328, 8
      %s330 = scalar_lea.vmem %s9, %s329
      %v332 = vld [vmem:[%s326] sm:$0xff]
      %v333 = vld [vmem:[%s326 + $0x10] sm:$0xff]
      %v334 = vld [vmem:[%s326 + $0x20] sm:$0xff]
      %v335 = vld [vmem:[%s326 + $0x30] sm:$0xff]
      %v336 = vld [vmem:[%s326 + $0x40] sm:$0xff]
      %v337 = vld [vmem:[%s326 + $0x50] sm:$0xff]
      %v338 = vld [vmem:[%s326 + $0x60] sm:$0xff]
      %v339 = vld [vmem:[%s326 + $0x70] sm:$0xff]
      %v340 = vpack.c.bf16 %v333, %v332
      %v341 = vpack.c.bf16 %v335, %v334
      %v342 = vpack.c.bf16 %v337, %v336
      %v343 = vpack.c.bf16 %v339, %v338
      %v344 = vld [vmem:[%s1] sm:$0xf]
      %v345 = vld [vmem:[%s1 + $0x4] sm:$0x3]
      %v346 = vld [vmem:[%s326 + $0x1] sm:$0xff]
      %v347 = vld [vmem:[%s326 + $0x11] sm:$0xff]
      %v348 = vld [vmem:[%s326 + $0x21] sm:$0xff]
      %v349 = vld [vmem:[%s326 + $0x31] sm:$0xff]
      %v350 = vld [vmem:[%s326 + $0x41] sm:$0xff]
      %v351 = vld [vmem:[%s326 + $0x51] sm:$0xff]
      %v352 = vld [vmem:[%s326 + $0x61] sm:$0xff]
      %v353 = vld [vmem:[%s326 + $0x71] sm:$0xff]
      %v354 = vpack.c.bf16 %v347, %v346
      %v355 = vpack.c.bf16 %v349, %v348
      %v356 = vpack.c.bf16 %v351, %v350
      %v357 = vpack.c.bf16 %v353, %v352
      %s358 = scalar_lea.vmem %s1, 8
      %v359 = vld [vmem:[%s358] sm:$0xf]
      %v360 = vld [vmem:[%s358 + $0x4] sm:$0x3]
      %v363 = vunpack.c.l.b16 %v359
      %v364 = vunpack.c.l.b16 %v360
      %v365 = vpack.c.b16 %v364, %v363
      %vm366 = vcmask 97280
      %v368 = vsel %vm366, %v354, 0
      %v371 = vsel %vm366, %v355, 0
      %v374 = vsel %vm366, %v356, 0
      %v377 = vsel %vm366, %v357, 0
      %vm379 = vcmask 1045504
      %v381 = vsel %vm379, %v365, 0
      %383 = vmatprep.subr.bf16.mxu0 0
      %384 = vmatpush1.bf16.msra.mxu0 0
      %385 = vmatprep.subr.bf16.mxu0 0
      %386 = vmatpush1.bf16.msra.mxu0 0
      %387 = vmatprep.subr.bf16.mxu0 0
      %388 = vmatpush1.bf16.msra.mxu0 0
      %389 = vmatprep.subr.bf16.mxu0 0
      %390 = vmatpush1.bf16.msra.mxu0 0
      %391 = vmatprep.subr.bf16.mxu0 0
      %392 = vmatpush1.bf16.msra.mxu0 0
      %393 = vmatprep.subr.bf16.mxu0 0
      %394 = vmatpush1.bf16.msra.mxu0 0
      %395 = vmatprep.subr.bf16.mxu0 0
      %396 = vmatpush1.bf16.msra.mxu0 0
      %397 = vmatprep.subr.bf16.mxu0 0
      %398 = vmatpush1.bf16.msra.mxu0 %v381
      %399 = vmatprep.subr.bf16.mxu0 0
      %400 = vmatpush2.bf16.msra.mxu0 0
      %401 = vmatprep.subr.bf16.mxu0 0
      %402 = vmatpush2.bf16.msra.mxu0 0
      %403 = vmatprep.subr.bf16.mxu0 0
      %404 = vmatpush2.bf16.msra.mxu0 0
      %405 = vmatprep.subr.bf16.mxu0 0
      %406 = vmatpush2.bf16.msra.mxu0 0
      %407 = vmatprep.subr.bf16.mxu0 0
      %408 = vmatpush2.bf16.msra.mxu0 0
      %409 = vmatprep.subr.bf16.mxu0 0
      %410 = vmatpush2.bf16.msra.mxu0 0
      %411 = vmatprep.subr.bf16.mxu0 0
      %412 = vmatpush2.bf16.msra.mxu0 0
      %413 = vmatprep.subr.bf16.mxu0 0
      %414 = vmatpush2.bf16.msra.mxu0 0
      %415 = vmatprep.mubr.bf16.mxu0 0
      %416 = vmatmul.mubr.bf16.gmra.mxu0 %v368
      %v417 = vpop.f32.mrf.mxu0
      %v418 = vadd.f32 0.0, %v417
      %v419 = vpop.f32.mrf.mxu0
      %v420 = vpop.f32.mrf.mxu0
      %v421 = vadd.f32 0.0, %v420
      %v422 = vpop.f32.mrf.mxu0
      %423 = vmatprep.mubr.bf16.mxu0 0
      %424 = vmatmul.mubr.bf16.gmra.mxu0 %v371
      %v425 = vpop.f32.mrf.mxu0
      %v426 = vadd.f32 0.0, %v425
      %v427 = vpop.f32.mrf.mxu0
      %v428 = vpop.f32.mrf.mxu0
      %v429 = vadd.f32 0.0, %v428
      %v430 = vpop.f32.mrf.mxu0
      %431 = vmatprep.mubr.bf16.mxu0 0
      %432 = vmatmul.mubr.bf16.gmra.mxu0 %v374
      %v433 = vpop.f32.mrf.mxu0
      %v434 = vadd.f32 0.0, %v433
      %v435 = vpop.f32.mrf.mxu0
      %v436 = vpop.f32.mrf.mxu0
      %v437 = vadd.f32 0.0, %v436
      %v438 = vpop.f32.mrf.mxu0
      %439 = vmatprep.mubr.bf16.mxu0 0
      %440 = vmatmul.mubr.bf16.gmra.mxu0 %v377
      %v441 = vpop.f32.mrf.mxu0
      %v442 = vadd.f32 0.0, %v441
      %v443 = vpop.f32.mrf.mxu0
      %v444 = vpop.f32.mrf.mxu0
      %v445 = vadd.f32 0.0, %v444
      %v446 = vpop.f32.mrf.mxu0
      %447 = vdwg.mxu0
      %v450 = vunpack.c.l.b16 %v344
      %v451 = vunpack.c.l.b16 %v345
      %v452 = vpack.c.b16 %v451, %v450
      %v454 = vsel %vm366, %v340, 0
      %v457 = vsel %vm366, %v341, 0
      %v460 = vsel %vm366, %v342, 0
      %v463 = vsel %vm366, %v343, 0
      %v466 = vsel %vm379, %v452, 0
      %468 = vmatprep.subr.bf16.mxu0 0
      %469 = vmatpush1.bf16.msra.mxu0 0
      %470 = vmatprep.subr.bf16.mxu0 0
      %471 = vmatpush1.bf16.msra.mxu0 0
      %472 = vmatprep.subr.bf16.mxu0 0
      %473 = vmatpush1.bf16.msra.mxu0 0
      %474 = vmatprep.subr.bf16.mxu0 0
      %475 = vmatpush1.bf16.msra.mxu0 0
      %476 = vmatprep.subr.bf16.mxu0 0
      %477 = vmatpush1.bf16.msra.mxu0 0
      %478 = vmatprep.subr.bf16.mxu0 0
      %479 = vmatpush1.bf16.msra.mxu0 0
      %480 = vmatprep.subr.bf16.mxu0 0
      %481 = vmatpush1.bf16.msra.mxu0 0
      %482 = vmatprep.subr.bf16.mxu0 0
      %483 = vmatpush1.bf16.msra.mxu0 %v466
      %484 = vmatprep.subr.bf16.mxu0 0
      %485 = vmatpush2.bf16.msra.mxu0 0
      %486 = vmatprep.subr.bf16.mxu0 0
      %487 = vmatpush2.bf16.msra.mxu0 0
      %488 = vmatprep.subr.bf16.mxu0 0
      %489 = vmatpush2.bf16.msra.mxu0 0
      %490 = vmatprep.subr.bf16.mxu0 0
      %491 = vmatpush2.bf16.msra.mxu0 0
      %492 = vmatprep.subr.bf16.mxu0 0
      %493 = vmatpush2.bf16.msra.mxu0 0
      %494 = vmatprep.subr.bf16.mxu0 0
      %495 = vmatpush2.bf16.msra.mxu0 0
      %496 = vmatprep.subr.bf16.mxu0 0
      %497 = vmatpush2.bf16.msra.mxu0 0
      %498 = vmatprep.subr.bf16.mxu0 0
      %499 = vmatpush2.bf16.msra.mxu0 0
      %500 = vmatprep.mubr.bf16.mxu0 0
      %501 = vmatmul.mubr.bf16.gmra.mxu0 %v454
      %v502 = vpop.f32.mrf.mxu0
      %v503 = vadd.f32 %v418, %v502
      %v504 = vpop.f32.mrf.mxu0
      %v505 = vpop.f32.mrf.mxu0
      %v506 = vadd.f32 %v421, %v505
      %v507 = vpop.f32.mrf.mxu0
      %508 = vmatprep.mubr.bf16.mxu0 0
      %509 = vmatmul.mubr.bf16.gmra.mxu0 %v457
      %v510 = vpop.f32.mrf.mxu0
      %v511 = vadd.f32 %v426, %v510
      %v512 = vpop.f32.mrf.mxu0
      %v513 = vpop.f32.mrf.mxu0
      %v514 = vadd.f32 %v429, %v513
      %v515 = vpop.f32.mrf.mxu0
      %516 = vmatprep.mubr.bf16.mxu0 0
      %517 = vmatmul.mubr.bf16.gmra.mxu0 %v460
      %v518 = vpop.f32.mrf.mxu0
      %v519 = vadd.f32 %v434, %v518
      %v520 = vpop.f32.mrf.mxu0
      %v521 = vpop.f32.mrf.mxu0
      %v522 = vadd.f32 %v437, %v521
      %v523 = vpop.f32.mrf.mxu0
      %524 = vmatprep.mubr.bf16.mxu0 0
      %525 = vmatmul.mubr.bf16.gmra.mxu0 %v463
      %v526 = vpop.f32.mrf.mxu0
      %v527 = vadd.f32 %v442, %v526
      %v528 = vpop.f32.mrf.mxu0
      %v529 = vpop.f32.mrf.mxu0
      %v530 = vadd.f32 %v445, %v529
      %v531 = vpop.f32.mrf.mxu0
      %532 = vdwg.mxu0
      %s533 = scalar_lea.vmem %s326, 16
      %v534 = vld [vmem:[%s533] sm:$0xff]
      %v535 = vld [vmem:[%s533 + $0x10] sm:$0xff]
      %v536 = vld [vmem:[%s533 + $0x20] sm:$0xff]
      %v537 = vld [vmem:[%s533 + $0x30] sm:$0xff]
      %v538 = vld [vmem:[%s533 + $0x40] sm:$0xff]
      %v539 = vld [vmem:[%s533 + $0x50] sm:$0xff]
      %v540 = vld [vmem:[%s533 + $0x60] sm:$0xff]
      %v541 = vld [vmem:[%s533 + $0x70] sm:$0xff]
      %v542 = vpack.c.bf16 %v535, %v534
      %v543 = vpack.c.bf16 %v537, %v536
      %v544 = vpack.c.bf16 %v539, %v538
      %v545 = vpack.c.bf16 %v541, %v540
      %s546 = scalar_lea.vmem %s1, 16
      %v547 = vld [vmem:[%s546] sm:$0xf]
      %v548 = vld [vmem:[%s546 + $0x4] sm:$0x3]
      %v551 = vunpack.c.l.b16 %v547
      %v552 = vunpack.c.l.b16 %v548
      %v553 = vpack.c.b16 %v552, %v551
      %v555 = vsel %vm366, %v542, 0
      %v558 = vsel %vm366, %v543, 0
      %v561 = vsel %vm366, %v544, 0
      %v564 = vsel %vm366, %v545, 0
      %v567 = vsel %vm379, %v553, 0
      %569 = vmatprep.subr.bf16.mxu0 0
      %570 = vmatpush1.bf16.msra.mxu0 0
      %571 = vmatprep.subr.bf16.mxu0 0
      %572 = vmatpush1.bf16.msra.mxu0 0
      %573 = vmatprep.subr.bf16.mxu0 0
      %574 = vmatpush1.bf16.msra.mxu0 0
      %575 = vmatprep.subr.bf16.mxu0 0
      %576 = vmatpush1.bf16.msra.mxu0 0
      %577 = vmatprep.subr.bf16.mxu0 0
      %578 = vmatpush1.bf16.msra.mxu0 0
      %579 = vmatprep.subr.bf16.mxu0 0
      %580 = vmatpush1.bf16.msra.mxu0 0
      %581 = vmatprep.subr.bf16.mxu0 0
      %582 = vmatpush1.bf16.msra.mxu0 0
      %583 = vmatprep.subr.bf16.mxu0 0
      %584 = vmatpush1.bf16.msra.mxu0 %v567
      %585 = vmatprep.subr.bf16.mxu0 0
      %586 = vmatpush2.bf16.msra.mxu0 0
      %587 = vmatprep.subr.bf16.mxu0 0
      %588 = vmatpush2.bf16.msra.mxu0 0
      %589 = vmatprep.subr.bf16.mxu0 0
      %590 = vmatpush2.bf16.msra.mxu0 0
      %591 = vmatprep.subr.bf16.mxu0 0
      %592 = vmatpush2.bf16.msra.mxu0 0
      %593 = vmatprep.subr.bf16.mxu0 0
      %594 = vmatpush2.bf16.msra.mxu0 0
      %595 = vmatprep.subr.bf16.mxu0 0
      %596 = vmatpush2.bf16.msra.mxu0 0
      %597 = vmatprep.subr.bf16.mxu0 0
      %598 = vmatpush2.bf16.msra.mxu0 0
      %599 = vmatprep.subr.bf16.mxu0 0
      %600 = vmatpush2.bf16.msra.mxu0 0
      %601 = vmatprep.mubr.bf16.mxu0 0
      %602 = vmatmul.mubr.bf16.gmra.mxu0 %v555
      %v603 = vpop.f32.mrf.mxu0
      %v604 = vadd.f32 0.0, %v603
      %v605 = vpop.f32.mrf.mxu0
      %v606 = vpop.f32.mrf.mxu0
      %v607 = vadd.f32 0.0, %v606
      %v608 = vpop.f32.mrf.mxu0
      %609 = vmatprep.mubr.bf16.mxu0 0
      %610 = vmatmul.mubr.bf16.gmra.mxu0 %v558
      %v611 = vpop.f32.mrf.mxu0
      %v612 = vadd.f32 0.0, %v611
      %v613 = vpop.f32.mrf.mxu0
      %v614 = vpop.f32.mrf.mxu0
      %v615 = vadd.f32 0.0, %v614
      %v616 = vpop.f32.mrf.mxu0
      %617 = vmatprep.mubr.bf16.mxu0 0
      %618 = vmatmul.mubr.bf16.gmra.mxu0 %v561
      %v619 = vpop.f32.mrf.mxu0
      %v620 = vadd.f32 0.0, %v619
      %v621 = vpop.f32.mrf.mxu0
      %v622 = vpop.f32.mrf.mxu0
      %v623 = vadd.f32 0.0, %v622
      %v624 = vpop.f32.mrf.mxu0
      %625 = vmatprep.mubr.bf16.mxu0 0
      %626 = vmatmul.mubr.bf16.gmra.mxu0 %v564
      %v627 = vpop.f32.mrf.mxu0
      %v628 = vadd.f32 0.0, %v627
      %v629 = vpop.f32.mrf.mxu0
      %v630 = vpop.f32.mrf.mxu0
      %v631 = vadd.f32 0.0, %v630
      %v632 = vpop.f32.mrf.mxu0
      %633 = vdwg.mxu0
      %v634 = vadd.f32 %v503, %v604
      %v635 = vadd.f32 %v506, %v607
      %v636 = vadd.f32 %v511, %v612
      %v637 = vadd.f32 %v514, %v615
      %v638 = vadd.f32 %v519, %v620
      %v639 = vadd.f32 %v522, %v623
      %v640 = vadd.f32 %v527, %v628
      %v641 = vadd.f32 %v530, %v631
      %v642 = vld [vmem:[%s533 + $0x1] sm:$0xff]
      %v643 = vld [vmem:[%s533 + $0x11] sm:$0xff]
      %v644 = vld [vmem:[%s533 + $0x21] sm:$0xff]
      %v645 = vld [vmem:[%s533 + $0x31] sm:$0xff]
      %v646 = vld [vmem:[%s533 + $0x41] sm:$0xff]
      %v647 = vld [vmem:[%s533 + $0x51] sm:$0xff]
      %v648 = vld [vmem:[%s533 + $0x61] sm:$0xff]
      %v649 = vld [vmem:[%s533 + $0x71] sm:$0xff]
      %v650 = vpack.c.bf16 %v643, %v642
      %v651 = vpack.c.bf16 %v645, %v644
      %v652 = vpack.c.bf16 %v647, %v646
      %v653 = vpack.c.bf16 %v649, %v648
      %s654 = scalar_lea.vmem %s1, 24
      %v655 = vld [vmem:[%s654] sm:$0xf]
      %v656 = vld [vmem:[%s654 + $0x4] sm:$0x3]
      %v659 = vunpack.c.l.b16 %v655
      %v660 = vunpack.c.l.b16 %v656
      %v661 = vpack.c.b16 %v660, %v659
      %v663 = vsel %vm366, %v650, 0
      %v666 = vsel %vm366, %v651, 0
      %v669 = vsel %vm366, %v652, 0
      %v672 = vsel %vm366, %v653, 0
      %v675 = vsel %vm379, %v661, 0
      %677 = vmatprep.subr.bf16.mxu0 0
      %678 = vmatpush1.bf16.msra.mxu0 0
      %679 = vmatprep.subr.bf16.mxu0 0
      %680 = vmatpush1.bf16.msra.mxu0 0
      %681 = vmatprep.subr.bf16.mxu0 0
      %682 = vmatpush1.bf16.msra.mxu0 0
      %683 = vmatprep.subr.bf16.mxu0 0
      %684 = vmatpush1.bf16.msra.mxu0 0
      %685 = vmatprep.subr.bf16.mxu0 0
      %686 = vmatpush1.bf16.msra.mxu0 0
      %687 = vmatprep.subr.bf16.mxu0 0
      %688 = vmatpush1.bf16.msra.mxu0 0
      %689 = vmatprep.subr.bf16.mxu0 0
      %690 = vmatpush1.bf16.msra.mxu0 0
      %691 = vmatprep.subr.bf16.mxu0 0
      %692 = vmatpush1.bf16.msra.mxu0 %v675
      %693 = vmatprep.subr.bf16.mxu0 0
      %694 = vmatpush2.bf16.msra.mxu0 0
      %695 = vmatprep.subr.bf16.mxu0 0
      %696 = vmatpush2.bf16.msra.mxu0 0
      %697 = vmatprep.subr.bf16.mxu0 0
      %698 = vmatpush2.bf16.msra.mxu0 0
      %699 = vmatprep.subr.bf16.mxu0 0
      %700 = vmatpush2.bf16.msra.mxu0 0
      %701 = vmatprep.subr.bf16.mxu0 0
      %702 = vmatpush2.bf16.msra.mxu0 0
      %703 = vmatprep.subr.bf16.mxu0 0
      %704 = vmatpush2.bf16.msra.mxu0 0
      %705 = vmatprep.subr.bf16.mxu0 0
      %706 = vmatpush2.bf16.msra.mxu0 0
      %707 = vmatprep.subr.bf16.mxu0 0
      %708 = vmatpush2.bf16.msra.mxu0 0
      %709 = vmatprep.mubr.bf16.mxu0 0
      %710 = vmatmul.mubr.bf16.gmra.mxu0 %v663
      %v711 = vpop.f32.mrf.mxu0
      %v712 = vadd.f32 0.0, %v711
      %v713 = vpop.f32.mrf.mxu0
      %v714 = vpop.f32.mrf.mxu0
      %v715 = vadd.f32 0.0, %v714
      %v716 = vpop.f32.mrf.mxu0
      %717 = vmatprep.mubr.bf16.mxu0 0
      %718 = vmatmul.mubr.bf16.gmra.mxu0 %v666
      %v719 = vpop.f32.mrf.mxu0
      %v720 = vadd.f32 0.0, %v719
      %v721 = vpop.f32.mrf.mxu0
      %v722 = vpop.f32.mrf.mxu0
      %v723 = vadd.f32 0.0, %v722
      %v724 = vpop.f32.mrf.mxu0
      %725 = vmatprep.mubr.bf16.mxu0 0
      %726 = vmatmul.mubr.bf16.gmra.mxu0 %v669
      %v727 = vpop.f32.mrf.mxu0
      %v728 = vadd.f32 0.0, %v727
      %v729 = vpop.f32.mrf.mxu0
      %v730 = vpop.f32.mrf.mxu0
      %v731 = vadd.f32 0.0, %v730
      %v732 = vpop.f32.mrf.mxu0
      %733 = vmatprep.mubr.bf16.mxu0 0
      %734 = vmatmul.mubr.bf16.gmra.mxu0 %v672
      %v735 = vpop.f32.mrf.mxu0
      %v736 = vadd.f32 0.0, %v735
      %v737 = vpop.f32.mrf.mxu0
      %v738 = vpop.f32.mrf.mxu0
      %v739 = vadd.f32 0.0, %v738
      %v740 = vpop.f32.mrf.mxu0
      %741 = vdwg.mxu0
      %v742 = vadd.f32 %v634, %v712
      %v743 = vadd.f32 %v635, %v715
      %v744 = vadd.f32 %v636, %v720
      %v745 = vadd.f32 %v637, %v723
      %v746 = vadd.f32 %v638, %v728
      %v747 = vadd.f32 %v639, %v731
      %v748 = vadd.f32 %v640, %v736
      %v749 = vadd.f32 %v641, %v739
      %v750 = vld [vmem:[%s2] sm:$0x1]
      %v752 = vlaneseq
      %v753 = vshrl.u32 %v752, 7
      %v754 = vsub.s32 0, %v753
      %v755 = vrot.slane %v750, %v754
      %v757 = vadd.f32 %v742, %v755
      %v758 = vadd.f32 %v743, %v755
      %v759 = vadd.f32 %v744, %v755
      %v760 = vadd.f32 %v745, %v755
      %v761 = vadd.f32 %v746, %v755
      %v762 = vadd.f32 %v747, %v755
      %v763 = vadd.f32 %v748, %v755
      %v764 = vadd.f32 %v749, %v755
      %v765 = vxor.u32 %v757, 2147483648
      %v766 = vxor.u32 %v758, 2147483648
      %v767 = vxor.u32 %v759, 2147483648
      %v768 = vxor.u32 %v760, 2147483648
      %v769 = vxor.u32 %v761, 2147483648
      %v770 = vxor.u32 %v762, 2147483648
      %v771 = vxor.u32 %v763, 2147483648
      %v772 = vxor.u32 %v764, 2147483648
      %v773 = vmul.f32 %v765, 1.442695
      %v774 = vpow.pop %v773
      %v775 = vmul.f32 %v766, 1.442695
      %v776 = vpow.pop %v775
      %v777 = vmul.f32 %v767, 1.442695
      %v778 = vpow.pop %v777
      %v779 = vmul.f32 %v768, 1.442695
      %v780 = vpow.pop %v779
      %v781 = vmul.f32 %v769, 1.442695
      %v782 = vpow.pop %v781
      %v783 = vmul.f32 %v770, 1.442695
      %v784 = vpow.pop %v783
      %v785 = vmul.f32 %v771, 1.442695
      %v786 = vpow.pop %v785
      %v787 = vmul.f32 %v772, 1.442695
      %v788 = vpow.pop %v787
      %v789 = vadd.f32 %v774, 1.0
      %v790 = vadd.f32 %v776, 1.0
      %v791 = vadd.f32 %v778, 1.0
      %v792 = vadd.f32 %v780, 1.0
      %v793 = vadd.f32 %v782, 1.0
      %v794 = vadd.f32 %v784, 1.0
      %v795 = vadd.f32 %v786, 1.0
      %v796 = vadd.f32 %v788, 1.0
      %v797 = vrcp.pop %v789
      %v798 = vmul.f32 1.0, %v797
      %v799 = vrcp.pop %v790
      %v800 = vmul.f32 1.0, %v799
      %v801 = vrcp.pop %v791
      %v802 = vmul.f32 1.0, %v801
      %v803 = vrcp.pop %v792
      %v804 = vmul.f32 1.0, %v803
      %v805 = vrcp.pop %v793
      %v806 = vmul.f32 1.0, %v805
      %v807 = vrcp.pop %v794
      %v808 = vmul.f32 1.0, %v807
      %v809 = vrcp.pop %v795
      %v810 = vmul.f32 1.0, %v809
      %v811 = vrcp.pop %v796
      %v812 = vmul.f32 1.0, %v811
      %v813 = vmul.f32 %v757, %v798
      %v814 = vmul.f32 %v758, %v800
      %v815 = vmul.f32 %v759, %v802
      %v816 = vmul.f32 %v760, %v804
      %v817 = vmul.f32 %v761, %v806
      %v818 = vmul.f32 %v762, %v808
      %v819 = vmul.f32 %v763, %v810
      %v820 = vmul.f32 %v764, %v812
      %821 = vst [vmem:[#allocation2] sm:$0xff] 0.0
      %822 = vst [vmem:[#allocation2 + $0x8] sm:$0x3] 0.0
      %823 = vst [vmem:[#allocation2 + $0x10] sm:$0xff] 0.0
      %824 = vst [vmem:[#allocation2 + $0x18] sm:$0x3] 0.0
      %825 = vst [vmem:[#allocation2 + $0x20] sm:$0xff] 0.0
      %826 = vst [vmem:[#allocation2 + $0x28] sm:$0x3] 0.0
      %827 = vst [vmem:[#allocation2 + $0x30] sm:$0xff] 0.0
      %828 = vst [vmem:[#allocation2 + $0x38] sm:$0x3] 0.0
      %829 = vst [vmem:[#allocation2 + $0x40] sm:$0xff] 0.0
      %830 = vst [vmem:[#allocation2 + $0x48] sm:$0x3] 0.0
      %831 = vst [vmem:[#allocation2 + $0x50] sm:$0xff] 0.0
      %832 = vst [vmem:[#allocation2 + $0x58] sm:$0x3] 0.0
      %833 = vst [vmem:[#allocation2 + $0x60] sm:$0xff] 0.0
      %834 = vst [vmem:[#allocation2 + $0x68] sm:$0x3] 0.0
      %835 = vst [vmem:[#allocation2 + $0x70] sm:$0xff] 0.0
      %836 = vst [vmem:[#allocation2 + $0x78] sm:$0x3] 0.0
      %837 = vst [vmem:[#allocation2 + $0x80] sm:$0xff] 0.0
      %838 = vst [vmem:[#allocation2 + $0x88] sm:$0x3] 0.0
      %839 = vst [vmem:[#allocation2 + $0x90] sm:$0xff] 0.0
      %840 = vst [vmem:[#allocation2 + $0x98] sm:$0x3] 0.0
      %s841 = scalar_lea.vmem [#allocation2], 16
      %842 = vst [vmem:[%s841 + $0x1] sm:$0xff] %v813
      %843 = vst [vmem:[%s841 + $0x11] sm:$0xff] %v814
      %844 = vst [vmem:[%s841 + $0x21] sm:$0xff] %v815
      %845 = vst [vmem:[%s841 + $0x31] sm:$0xff] %v816
      %846 = vst [vmem:[%s841 + $0x41] sm:$0xff] %v817
      %847 = vst [vmem:[%s841 + $0x51] sm:$0xff] %v818
      %848 = vst [vmem:[%s841 + $0x61] sm:$0xff] %v819
      %849 = vst [vmem:[%s841 + $0x71] sm:$0xff] %v820
      %v850 = vld [vmem:[%s3] sm:$0xff]
      %v851 = vld [vmem:[%s3 + $0x8] sm:$0x1]
      %v852 = vld [vmem:[#allocation2] sm:$0xff]
      %v853 = vld [vmem:[#allocation2 + $0x10] sm:$0xff]
      %v854 = vld [vmem:[#allocation2 + $0x20] sm:$0xff]
      %v855 = vld [vmem:[#allocation2 + $0x30] sm:$0xff]
      %v856 = vld [vmem:[#allocation2 + $0x40] sm:$0xff]
      %v857 = vld [vmem:[#allocation2 + $0x50] sm:$0xff]
      %v858 = vld [vmem:[#allocation2 + $0x60] sm:$0xff]
      %v859 = vld [vmem:[#allocation2 + $0x70] sm:$0xff]
      %v860 = vlaneseq
      %v861 = vshrl.u32 %v860, 7
      %v862 = vsub.s32 0, %v861
      %v863 = vrot.slane %v850, %v862
      %v864 = vmul.f32 %v852, %v863
      %v865 = vmul.f32 %v853, %v863
      %v866 = vmul.f32 %v854, %v863
      %v867 = vmul.f32 %v855, %v863
      %v868 = vmul.f32 %v856, %v863
      %v869 = vmul.f32 %v857, %v863
      %v870 = vmul.f32 %v858, %v863
      %v871 = vmul.f32 %v859, %v863
      %v872 = vadd.f32 %v864, 0.0
      %v873 = vadd.f32 %v865, 0.0
      %v874 = vadd.f32 %v866, 0.0
      %v875 = vadd.f32 %v867, 0.0
      %v876 = vadd.f32 %v868, 0.0
      %v877 = vadd.f32 %v869, 0.0
      %v878 = vadd.f32 %v870, 0.0
      %v879 = vadd.f32 %v871, 0.0
      %v880 = vld [vmem:[#allocation2 + $0x1] sm:$0xff]
      %v881 = vld [vmem:[#allocation2 + $0x11] sm:$0xff]
      %v882 = vld [vmem:[#allocation2 + $0x21] sm:$0xff]
      %v883 = vld [vmem:[#allocation2 + $0x31] sm:$0xff]
      %v884 = vld [vmem:[#allocation2 + $0x41] sm:$0xff]
      %v885 = vld [vmem:[#allocation2 + $0x51] sm:$0xff]
      %v886 = vld [vmem:[#allocation2 + $0x61] sm:$0xff]
      %v887 = vld [vmem:[#allocation2 + $0x71] sm:$0xff]
      %v888 = vlaneseq
      %v889 = vshrl.u32 %v888, 7
      %v890 = vsub.s32 1, %v889
      %v891 = vrot.slane %v850, %v890
      %v892 = vmul.f32 %v880, %v891
      %v893 = vmul.f32 %v881, %v891
      %v894 = vmul.f32 %v882, %v891
      %v895 = vmul.f32 %v883, %v891
      %v896 = vmul.f32 %v884, %v891
      %v897 = vmul.f32 %v885, %v891
      %v898 = vmul.f32 %v886, %v891
      %v899 = vmul.f32 %v887, %v891
      %v900 = vadd.f32 %v872, %v892
      %v901 = vadd.f32 %v873, %v893
      %v902 = vadd.f32 %v874, %v894
      %v903 = vadd.f32 %v875, %v895
      %v904 = vadd.f32 %v876, %v896
      %v905 = vadd.f32 %v877, %v897
      %v906 = vadd.f32 %v878, %v898
      %v907 = vadd.f32 %v879, %v899
      %v908 = vld [vmem:[#allocation2 + $0x2] sm:$0xff]
      %v909 = vld [vmem:[#allocation2 + $0x12] sm:$0xff]
      %v910 = vld [vmem:[#allocation2 + $0x22] sm:$0xff]
      %v911 = vld [vmem:[#allocation2 + $0x32] sm:$0xff]
      %v912 = vld [vmem:[#allocation2 + $0x42] sm:$0xff]
      %v913 = vld [vmem:[#allocation2 + $0x52] sm:$0xff]
      %v914 = vld [vmem:[#allocation2 + $0x62] sm:$0xff]
      %v915 = vld [vmem:[#allocation2 + $0x72] sm:$0xff]
      %v916 = vlaneseq
      %v917 = vshrl.u32 %v916, 7
      %v918 = vsub.s32 2, %v917
      %v919 = vrot.slane %v850, %v918
      %v920 = vmul.f32 %v908, %v919
      %v921 = vmul.f32 %v909, %v919
      %v922 = vmul.f32 %v910, %v919
      %v923 = vmul.f32 %v911, %v919
      %v924 = vmul.f32 %v912, %v919
      %v925 = vmul.f32 %v913, %v919
      %v926 = vmul.f32 %v914, %v919
      %v927 = vmul.f32 %v915, %v919
      %v928 = vadd.f32 %v900, %v920
      %v929 = vadd.f32 %v901, %v921
      %v930 = vadd.f32 %v902, %v922
      %v931 = vadd.f32 %v903, %v923
      %v932 = vadd.f32 %v904, %v924
      %v933 = vadd.f32 %v905, %v925
      %v934 = vadd.f32 %v906, %v926
      %v935 = vadd.f32 %v907, %v927
      %v936 = vld [vmem:[%s841] sm:$0xff]
      %v937 = vld [vmem:[%s841 + $0x10] sm:$0xff]
      %v938 = vld [vmem:[%s841 + $0x20] sm:$0xff]
      %v939 = vld [vmem:[%s841 + $0x30] sm:$0xff]
      %v940 = vld [vmem:[%s841 + $0x40] sm:$0xff]
      %v941 = vld [vmem:[%s841 + $0x50] sm:$0xff]
      %v942 = vld [vmem:[%s841 + $0x60] sm:$0xff]
      %v943 = vld [vmem:[%s841 + $0x70] sm:$0xff]
      %v944 = vlaneseq
      %v945 = vshrl.u32 %v944, 7
      %v946 = vsub.s32 3, %v945
      %v947 = vrot.slane %v850, %v946
      %v948 = vmul.f32 %v936, %v947
      %v949 = vmul.f32 %v937, %v947
      %v950 = vmul.f32 %v938, %v947
      %v951 = vmul.f32 %v939, %v947
      %v952 = vmul.f32 %v940, %v947
      %v953 = vmul.f32 %v941, %v947
      %v954 = vmul.f32 %v942, %v947
      %v955 = vmul.f32 %v943, %v947
      %v956 = vadd.f32 %v928, %v948
      %v957 = vadd.f32 %v929, %v949
      %v958 = vadd.f32 %v930, %v950
      %v959 = vadd.f32 %v931, %v951
      %v960 = vadd.f32 %v932, %v952
      %v961 = vadd.f32 %v933, %v953
      %v962 = vadd.f32 %v934, %v954
      %v963 = vadd.f32 %v935, %v955
      %v964 = vld [vmem:[%s841 + $0x1] sm:$0xff]
      %v965 = vld [vmem:[%s841 + $0x11] sm:$0xff]
      %v966 = vld [vmem:[%s841 + $0x21] sm:$0xff]
      %v967 = vld [vmem:[%s841 + $0x31] sm:$0xff]
      %v968 = vld [vmem:[%s841 + $0x41] sm:$0xff]
      %v969 = vld [vmem:[%s841 + $0x51] sm:$0xff]
      %v970 = vld [vmem:[%s841 + $0x61] sm:$0xff]
      %v971 = vld [vmem:[%s841 + $0x71] sm:$0xff]
      %v972 = vlaneseq
      %v973 = vshrl.u32 %v972, 7
      %v974 = vsub.s32 4, %v973
      %v975 = vrot.slane %v850, %v974
      %v976 = vmul.f32 %v964, %v975
      %v977 = vmul.f32 %v965, %v975
      %v978 = vmul.f32 %v966, %v975
      %v979 = vmul.f32 %v967, %v975
      %v980 = vmul.f32 %v968, %v975
      %v981 = vmul.f32 %v969, %v975
      %v982 = vmul.f32 %v970, %v975
      %v983 = vmul.f32 %v971, %v975
      %v984 = vadd.f32 %v956, %v976
      %v985 = vadd.f32 %v957, %v977
      %v986 = vadd.f32 %v958, %v978
      %v987 = vadd.f32 %v959, %v979
      %v988 = vadd.f32 %v960, %v980
      %v989 = vadd.f32 %v961, %v981
      %v990 = vadd.f32 %v962, %v982
      %v991 = vadd.f32 %v963, %v983
      %v992 = vld [vmem:[%s841 + $0x2] sm:$0xff]
      %v993 = vld [vmem:[%s841 + $0x12] sm:$0xff]
      %v994 = vld [vmem:[%s841 + $0x22] sm:$0xff]
      %v995 = vld [vmem:[%s841 + $0x32] sm:$0xff]
      %v996 = vld [vmem:[%s841 + $0x42] sm:$0xff]
      %v997 = vld [vmem:[%s841 + $0x52] sm:$0xff]
      %v998 = vld [vmem:[%s841 + $0x62] sm:$0xff]
      %v999 = vld [vmem:[%s841 + $0x72] sm:$0xff]
      %v1000 = vlaneseq
      %v1001 = vshrl.u32 %v1000, 7
      %v1002 = vsub.s32 5, %v1001
      %v1003 = vrot.slane %v850, %v1002
      %v1004 = vmul.f32 %v992, %v1003
      %v1005 = vmul.f32 %v993, %v1003
      %v1006 = vmul.f32 %v994, %v1003
      %v1007 = vmul.f32 %v995, %v1003
      %v1008 = vmul.f32 %v996, %v1003
      %v1009 = vmul.f32 %v997, %v1003
      %v1010 = vmul.f32 %v998, %v1003
      %v1011 = vmul.f32 %v999, %v1003
      %v1012 = vadd.f32 %v984, %v1004
      %v1013 = vadd.f32 %v985, %v1005
      %v1014 = vadd.f32 %v986, %v1006
      %v1015 = vadd.f32 %v987, %v1007
      %v1016 = vadd.f32 %v988, %v1008
      %v1017 = vadd.f32 %v989, %v1009
      %v1018 = vadd.f32 %v990, %v1010
      %v1019 = vadd.f32 %v991, %v1011
      %s1020 = scalar_lea.vmem [#allocation2], 32
      %v1021 = vld [vmem:[%s1020] sm:$0xff]
      %v1022 = vld [vmem:[%s1020 + $0x10] sm:$0xff]
      %v1023 = vld [vmem:[%s1020 + $0x20] sm:$0xff]
      %v1024 = vld [vmem:[%s1020 + $0x30] sm:$0xff]
      %v1025 = vld [vmem:[%s1020 + $0x40] sm:$0xff]
      %v1026 = vld [vmem:[%s1020 + $0x50] sm:$0xff]
      %v1027 = vld [vmem:[%s1020 + $0x60] sm:$0xff]
      %v1028 = vld [vmem:[%s1020 + $0x70] sm:$0xff]
      %v1029 = vlaneseq
      %v1030 = vshrl.u32 %v1029, 7
      %v1031 = vsub.s32 6, %v1030
      %v1032 = vrot.slane %v850, %v1031
      %v1033 = vmul.f32 %v1021, %v1032
      %v1034 = vmul.f32 %v1022, %v1032
      %v1035 = vmul.f32 %v1023, %v1032
      %v1036 = vmul.f32 %v1024, %v1032
      %v1037 = vmul.f32 %v1025, %v1032
      %v1038 = vmul.f32 %v1026, %v1032
      %v1039 = vmul.f32 %v1027, %v1032
      %v1040 = vmul.f32 %v1028, %v1032
      %v1041 = vadd.f32 %v1012, %v1033
      %v1042 = vadd.f32 %v1013, %v1034
      %v1043 = vadd.f32 %v1014, %v1035
      %v1044 = vadd.f32 %v1015, %v1036
      %v1045 = vadd.f32 %v1016, %v1037
      %v1046 = vadd.f32 %v1017, %v1038
      %v1047 = vadd.f32 %v1018, %v1039
      %v1048 = vadd.f32 %v1019, %v1040
      %v1049 = vld [vmem:[%s1020 + $0x1] sm:$0xff]
      %v1050 = vld [vmem:[%s1020 + $0x11] sm:$0xff]
      %v1051 = vld [vmem:[%s1020 + $0x21] sm:$0xff]
      %v1052 = vld [vmem:[%s1020 + $0x31] sm:$0xff]
      %v1053 = vld [vmem:[%s1020 + $0x41] sm:$0xff]
      %v1054 = vld [vmem:[%s1020 + $0x51] sm:$0xff]
      %v1055 = vld [vmem:[%s1020 + $0x61] sm:$0xff]
      %v1056 = vld [vmem:[%s1020 + $0x71] sm:$0xff]
      %v1057 = vlaneseq
      %v1058 = vshrl.u32 %v1057, 7
      %v1059 = vsub.s32 7, %v1058
      %v1060 = vrot.slane %v850, %v1059
      %v1061 = vmul.f32 %v1049, %v1060
      %v1062 = vmul.f32 %v1050, %v1060
      %v1063 = vmul.f32 %v1051, %v1060
      %v1064 = vmul.f32 %v1052, %v1060
      %v1065 = vmul.f32 %v1053, %v1060
      %v1066 = vmul.f32 %v1054, %v1060
      %v1067 = vmul.f32 %v1055, %v1060
      %v1068 = vmul.f32 %v1056, %v1060
      %v1069 = vadd.f32 %v1041, %v1061
      %v1070 = vadd.f32 %v1042, %v1062
      %v1071 = vadd.f32 %v1043, %v1063
      %v1072 = vadd.f32 %v1044, %v1064
      %v1073 = vadd.f32 %v1045, %v1065
      %v1074 = vadd.f32 %v1046, %v1066
      %v1075 = vadd.f32 %v1047, %v1067
      %v1076 = vadd.f32 %v1048, %v1068
      %v1077 = vld [vmem:[%s1020 + $0x2] sm:$0xff]
      %v1078 = vld [vmem:[%s1020 + $0x12] sm:$0xff]
      %v1079 = vld [vmem:[%s1020 + $0x22] sm:$0xff]
      %v1080 = vld [vmem:[%s1020 + $0x32] sm:$0xff]
      %v1081 = vld [vmem:[%s1020 + $0x42] sm:$0xff]
      %v1082 = vld [vmem:[%s1020 + $0x52] sm:$0xff]
      %v1083 = vld [vmem:[%s1020 + $0x62] sm:$0xff]
      %v1084 = vld [vmem:[%s1020 + $0x72] sm:$0xff]
      %v1085 = vlaneseq
      %v1086 = vshrl.u32 %v1085, 7
      %v1087 = vsub.s32 0, %v1086
      %v1088 = vrot.slane %v851, %v1087
      %v1089 = vmul.f32 %v1077, %v1088
      %v1090 = vmul.f32 %v1078, %v1088
      %v1091 = vmul.f32 %v1079, %v1088
      %v1092 = vmul.f32 %v1080, %v1088
      %v1093 = vmul.f32 %v1081, %v1088
      %v1094 = vmul.f32 %v1082, %v1088
      %v1095 = vmul.f32 %v1083, %v1088
      %v1096 = vmul.f32 %v1084, %v1088
      %v1097 = vadd.f32 %v1069, %v1089
      %v1098 = vadd.f32 %v1070, %v1090
      %v1099 = vadd.f32 %v1071, %v1091
      %v1100 = vadd.f32 %v1072, %v1092
      %v1101 = vadd.f32 %v1073, %v1093
      %v1102 = vadd.f32 %v1074, %v1094
      %v1103 = vadd.f32 %v1075, %v1095
      %v1104 = vadd.f32 %v1076, %v1096
      %v1105 = vld [vmem:[%s4] sm:$0x1]
      %v1107 = vlaneseq
      %v1108 = vshrl.u32 %v1107, 7
      %v1109 = vsub.s32 0, %v1108
      %v1110 = vrot.slane %v1105, %v1109
      %v1112 = vadd.f32 %v1097, %v1110
      %v1113 = vadd.f32 %v1098, %v1110
      %v1114 = vadd.f32 %v1099, %v1110
      %v1115 = vadd.f32 %v1100, %v1110
      %v1116 = vadd.f32 %v1101, %v1110
      %v1117 = vadd.f32 %v1102, %v1110
      %v1118 = vadd.f32 %v1103, %v1110
      %v1119 = vadd.f32 %v1104, %v1110
      %v1120 = vxor.u32 %v1112, 2147483648
      %v1121 = vxor.u32 %v1113, 2147483648
      %v1122 = vxor.u32 %v1114, 2147483648
      %v1123 = vxor.u32 %v1115, 2147483648
      %v1124 = vxor.u32 %v1116, 2147483648
      %v1125 = vxor.u32 %v1117, 2147483648
      %v1126 = vxor.u32 %v1118, 2147483648
      %v1127 = vxor.u32 %v1119, 2147483648
      %v1128 = vmul.f32 %v1120, 1.442695
      %v1129 = vpow.pop %v1128
      %v1130 = vmul.f32 %v1121, 1.442695
      %v1131 = vpow.pop %v1130
      %v1132 = vmul.f32 %v1122, 1.442695
      %v1133 = vpow.pop %v1132
      %v1134 = vmul.f32 %v1123, 1.442695
      %v1135 = vpow.pop %v1134
      %v1136 = vmul.f32 %v1124, 1.442695
      %v1137 = vpow.pop %v1136
      %v1138 = vmul.f32 %v1125, 1.442695
      %v1139 = vpow.pop %v1138
      %v1140 = vmul.f32 %v1126, 1.442695
      %v1141 = vpow.pop %v1140
      %v1142 = vmul.f32 %v1127, 1.442695
      %v1143 = vpow.pop %v1142
      %v1144 = vadd.f32 %v1129, 1.0
      %v1145 = vadd.f32 %v1131, 1.0
      %v1146 = vadd.f32 %v1133, 1.0
      %v1147 = vadd.f32 %v1135, 1.0
      %v1148 = vadd.f32 %v1137, 1.0
      %v1149 = vadd.f32 %v1139, 1.0
      %v1150 = vadd.f32 %v1141, 1.0
      %v1151 = vadd.f32 %v1143, 1.0
      %v1152 = vrcp.pop %v1144
      %v1153 = vmul.f32 1.0, %v1152
      %v1154 = vrcp.pop %v1145
      %v1155 = vmul.f32 1.0, %v1154
      %v1156 = vrcp.pop %v1146
      %v1157 = vmul.f32 1.0, %v1156
      %v1158 = vrcp.pop %v1147
      %v1159 = vmul.f32 1.0, %v1158
      %v1160 = vrcp.pop %v1148
      %v1161 = vmul.f32 1.0, %v1160
      %v1162 = vrcp.pop %v1149
      %v1163 = vmul.f32 1.0, %v1162
      %v1164 = vrcp.pop %v1150
      %v1165 = vmul.f32 1.0, %v1164
      %v1166 = vrcp.pop %v1151
      %v1167 = vmul.f32 1.0, %v1166
      %v1168 = vmul.f32 %v1112, %v1153
      %v1169 = vmul.f32 %v1113, %v1155
      %v1170 = vmul.f32 %v1114, %v1157
      %v1171 = vmul.f32 %v1115, %v1159
      %v1172 = vmul.f32 %v1116, %v1161
      %v1173 = vmul.f32 %v1117, %v1163
      %v1174 = vmul.f32 %v1118, %v1165
      %v1175 = vmul.f32 %v1119, %v1167
      %v1176 = vpack.c.bf16 %v1169, %v1168
      %v1177 = vpack.c.bf16 %v1171, %v1170
      %v1178 = vpack.c.bf16 %v1173, %v1172
      %v1179 = vpack.c.bf16 %v1175, %v1174
      %v1180 = vld [vmem:[%s5] sm:$0xf]
      %v1181 = vld [vmem:[%s5 + $0x4] sm:$0xf]
      %v1182 = vld [vmem:[%s5 + $0x8] sm:$0xf]
      %v1183 = vld [vmem:[%s5 + $0xc] sm:$0xf]
      %v1184 = vld [vmem:[%s5 + $0x10] sm:$0xf]
      %v1185 = vld [vmem:[%s5 + $0x14] sm:$0xf]
      %v1186 = vld [vmem:[%s5 + $0x18] sm:$0xf]
      %v1187 = vld [vmem:[%s5 + $0x1c] sm:$0xf]
      %v1188 = vld [vmem:[%s5 + $0x20] sm:$0xf]
      %v1189 = vld [vmem:[%s5 + $0x24] sm:$0xf]
      %v1190 = vld [vmem:[%s5 + $0x28] sm:$0xf]
      %v1191 = vld [vmem:[%s5 + $0x2c] sm:$0xf]
      %v1192 = vld [vmem:[%s5 + $0x30] sm:$0xf]
      %v1193 = vld [vmem:[%s5 + $0x34] sm:$0xf]
      %v1194 = vld [vmem:[%s5 + $0x38] sm:$0xf]
      %v1195 = vld [vmem:[%s5 + $0x3c] sm:$0xf]
      %v1196 = vld [vmem:[%s6] sm:$0x1]
      %v1198 = vlaneseq
      %v1199 = vshrl.u32 %v1198, 7
      %v1200 = vsub.s32 0, %v1199
      %v1201 = vrot.slane %v1196, %v1200
      %v1219 = vunpack.c.l.b16 %v1180
      %v1220 = vunpack.c.l.b16 %v1181
      %v1221 = vunpack.c.l.b16 %v1182
      %v1222 = vunpack.c.l.b16 %v1183
      %v1223 = vunpack.c.l.b16 %v1184
      %v1224 = vunpack.c.l.b16 %v1185
      %v1225 = vunpack.c.l.b16 %v1186
      %v1226 = vunpack.c.l.b16 %v1187
      %v1227 = vunpack.c.l.b16 %v1188
      %v1228 = vunpack.c.l.b16 %v1189
      %v1229 = vunpack.c.l.b16 %v1190
      %v1230 = vunpack.c.l.b16 %v1191
      %v1231 = vunpack.c.l.b16 %v1192
      %v1232 = vunpack.c.l.b16 %v1193
      %v1233 = vunpack.c.l.b16 %v1194
      %v1234 = vunpack.c.l.b16 %v1195
      %v1235 = vpack.c.b16 %v1220, %v1219
      %v1236 = vpack.c.b16 %v1222, %v1221
      %v1237 = vpack.c.b16 %v1224, %v1223
      %v1238 = vpack.c.b16 %v1226, %v1225
      %v1239 = vpack.c.b16 %v1228, %v1227
      %v1240 = vpack.c.b16 %v1230, %v1229
      %v1241 = vpack.c.b16 %v1232, %v1231
      %v1242 = vpack.c.b16 %v1234, %v1233
      %1251 = vmatprep.subr.bf16.mxu0 0
      %1252 = vmatpush1.bf16.msra.mxu0 %v1242
      %1253 = vmatprep.subr.bf16.mxu0 0
      %1254 = vmatpush1.bf16.msra.mxu0 %v1241
      %1255 = vmatprep.subr.bf16.mxu0 0
      %1256 = vmatpush1.bf16.msra.mxu0 %v1240
      %1257 = vmatprep.subr.bf16.mxu0 0
      %1258 = vmatpush1.bf16.msra.mxu0 %v1239
      %1259 = vmatprep.subr.bf16.mxu0 0
      %1260 = vmatpush1.bf16.msra.mxu0 %v1238
      %1261 = vmatprep.subr.bf16.mxu0 0
      %1262 = vmatpush1.bf16.msra.mxu0 %v1237
      %1263 = vmatprep.subr.bf16.mxu0 0
      %1264 = vmatpush1.bf16.msra.mxu0 %v1236
      %1265 = vmatprep.subr.bf16.mxu0 0
      %1266 = vmatpush1.bf16.msra.mxu0 %v1235
      %1267 = vmatprep.subr.bf16.mxu0 0
      %1268 = vmatpush2.bf16.msra.mxu0 0
      %1269 = vmatprep.subr.bf16.mxu0 0
      %1270 = vmatpush2.bf16.msra.mxu0 0
      %1271 = vmatprep.subr.bf16.mxu0 0
      %1272 = vmatpush2.bf16.msra.mxu0 0
      %1273 = vmatprep.subr.bf16.mxu0 0
      %1274 = vmatpush2.bf16.msra.mxu0 0
      %1275 = vmatprep.subr.bf16.mxu0 0
      %1276 = vmatpush2.bf16.msra.mxu0 0
      %1277 = vmatprep.subr.bf16.mxu0 0
      %1278 = vmatpush2.bf16.msra.mxu0 0
      %1279 = vmatprep.subr.bf16.mxu0 0
      %1280 = vmatpush2.bf16.msra.mxu0 0
      %1281 = vmatprep.subr.bf16.mxu0 0
      %1282 = vmatpush2.bf16.msra.mxu0 0
      %1283 = vmatprep.mubr.bf16.mxu0 0
      %1284 = vmatmul.mubr.bf16.gmra.mxu0 %v1176
      %v1285 = vpop.f32.mrf.mxu0
      %v1286 = vadd.f32 %v1201, %v1285
      %v1287 = vpop.f32.mrf.mxu0
      %v1288 = vpop.f32.mrf.mxu0
      %v1289 = vadd.f32 %v1201, %v1288
      %v1290 = vpop.f32.mrf.mxu0
      %1291 = vmatprep.mubr.bf16.mxu0 0
      %1292 = vmatmul.mubr.bf16.gmra.mxu0 %v1177
      %v1293 = vpop.f32.mrf.mxu0
      %v1294 = vadd.f32 %v1201, %v1293
      %v1295 = vpop.f32.mrf.mxu0
      %v1296 = vpop.f32.mrf.mxu0
      %v1297 = vadd.f32 %v1201, %v1296
      %v1298 = vpop.f32.mrf.mxu0
      %1299 = vmatprep.mubr.bf16.mxu0 0
      %1300 = vmatmul.mubr.bf16.gmra.mxu0 %v1178
      %v1301 = vpop.f32.mrf.mxu0
      %v1302 = vadd.f32 %v1201, %v1301
      %v1303 = vpop.f32.mrf.mxu0
      %v1304 = vpop.f32.mrf.mxu0
      %v1305 = vadd.f32 %v1201, %v1304
      %v1306 = vpop.f32.mrf.mxu0
      %1307 = vmatprep.mubr.bf16.mxu0 0
      %1308 = vmatmul.mubr.bf16.gmra.mxu0 %v1179
      %v1309 = vpop.f32.mrf.mxu0
      %v1310 = vadd.f32 %v1201, %v1309
      %v1311 = vpop.f32.mrf.mxu0
      %v1312 = vpop.f32.mrf.mxu0
      %v1313 = vadd.f32 %v1201, %v1312
      %v1314 = vpop.f32.mrf.mxu0
      %1315 = vdwg.mxu0
      %v1316 = vxor.u32 %v1286, 2147483648
      %v1317 = vxor.u32 %v1289, 2147483648
      %v1318 = vxor.u32 %v1294, 2147483648
      %v1319 = vxor.u32 %v1297, 2147483648
      %v1320 = vxor.u32 %v1302, 2147483648
      %v1321 = vxor.u32 %v1305, 2147483648
      %v1322 = vxor.u32 %v1310, 2147483648
      %v1323 = vxor.u32 %v1313, 2147483648
      %v1324 = vmul.f32 %v1316, 1.442695
      %v1325 = vpow.pop %v1324
      %v1326 = vmul.f32 %v1317, 1.442695
      %v1327 = vpow.pop %v1326
      %v1328 = vmul.f32 %v1318, 1.442695
      %v1329 = vpow.pop %v1328
      %v1330 = vmul.f32 %v1319, 1.442695
      %v1331 = vpow.pop %v1330
      %v1332 = vmul.f32 %v1320, 1.442695
      %v1333 = vpow.pop %v1332
      %v1334 = vmul.f32 %v1321, 1.442695
      %v1335 = vpow.pop %v1334
      %v1336 = vmul.f32 %v1322, 1.442695
      %v1337 = vpow.pop %v1336
      %v1338 = vmul.f32 %v1323, 1.442695
      %v1339 = vpow.pop %v1338
      %v1340 = vadd.f32 %v1325, 1.0
      %v1341 = vadd.f32 %v1327, 1.0
      %v1342 = vadd.f32 %v1329, 1.0
      %v1343 = vadd.f32 %v1331, 1.0
      %v1344 = vadd.f32 %v1333, 1.0
      %v1345 = vadd.f32 %v1335, 1.0
      %v1346 = vadd.f32 %v1337, 1.0
      %v1347 = vadd.f32 %v1339, 1.0
      %v1348 = vrcp.pop %v1340
      %v1349 = vmul.f32 1.0, %v1348
      %v1350 = vrcp.pop %v1341
      %v1351 = vmul.f32 1.0, %v1350
      %v1352 = vrcp.pop %v1342
      %v1353 = vmul.f32 1.0, %v1352
      %v1354 = vrcp.pop %v1343
      %v1355 = vmul.f32 1.0, %v1354
      %v1356 = vrcp.pop %v1344
      %v1357 = vmul.f32 1.0, %v1356
      %v1358 = vrcp.pop %v1345
      %v1359 = vmul.f32 1.0, %v1358
      %v1360 = vrcp.pop %v1346
      %v1361 = vmul.f32 1.0, %v1360
      %v1362 = vrcp.pop %v1347
      %v1363 = vmul.f32 1.0, %v1362
      %v1364 = vmul.f32 %v1286, %v1349
      %v1365 = vmul.f32 %v1289, %v1351
      %v1366 = vmul.f32 %v1294, %v1353
      %v1367 = vmul.f32 %v1297, %v1355
      %v1368 = vmul.f32 %v1302, %v1357
      %v1369 = vmul.f32 %v1305, %v1359
      %v1370 = vmul.f32 %v1310, %v1361
      %v1371 = vmul.f32 %v1313, %v1363
      %v1372 = vadd.f32 %v1364, %v1365
      %v1373 = vadd.f32 %v1372, %v1366
      %v1374 = vadd.f32 %v1373, %v1367
      %v1375 = vadd.f32 %v1374, %v1368
      %v1376 = vadd.f32 %v1375, %v1369
      %v1377 = vadd.f32 %v1376, %v1370
      %v1378 = vadd.f32 %v1377, %v1371
      %v1379 = vrot.slane %v1378, 4
      %v1380 = vadd.f32 %v1378, %v1379
      %v1381 = vrot.slane %v1380, 2
      %v1382 = vadd.f32 %v1380, %v1381
      %v1383 = vrot.slane %v1382, 1
      %v1384 = vadd.f32 %v1382, %v1383
      %v1385 = vmul.f32 %v1384, 0.015625
      %v1386 = vld [vmem:[%s7] sm:$0xff]
      %v1387 = vld [vmem:[%s7 + $0x8] sm:$0xff]
      %v1388 = vld [vmem:[%s7 + $0x10] sm:$0xff]
      %v1389 = vld [vmem:[%s7 + $0x18] sm:$0xff]
      %v1390 = vld [vmem:[%s7 + $0x20] sm:$0xff]
      %v1391 = vld [vmem:[%s7 + $0x28] sm:$0xff]
      %v1392 = vld [vmem:[%s7 + $0x30] sm:$0xff]
      %v1393 = vld [vmem:[%s7 + $0x38] sm:$0xff]
      %v1394 = vld [vmem:[%s7 + $0x40] sm:$0xff]
      %v1395 = vld [vmem:[%s7 + $0x48] sm:$0xff]
      %v1396 = vld [vmem:[%s7 + $0x50] sm:$0xff]
      %v1397 = vld [vmem:[%s7 + $0x58] sm:$0xff]
      %v1398 = vld [vmem:[%s7 + $0x60] sm:$0xff]
      %v1399 = vld [vmem:[%s7 + $0x68] sm:$0xff]
      %v1400 = vld [vmem:[%s7 + $0x70] sm:$0xff]
      %v1401 = vld [vmem:[%s7 + $0x78] sm:$0xff]
      %v1402 = vld [vmem:[%s8] sm:$0x1]
      %1403 = vmatprep.subr.mxu0 0.0
      %1404 = vmatpush1.msra.mxu0 %v1401
      %1405 = vmatprep.subr.mxu0 0.0
      %1406 = vmatpush1.msra.mxu0 %v1400
      %1407 = vmatprep.subr.mxu0 0.0
      %1408 = vmatpush1.msra.mxu0 %v1399
      %1409 = vmatprep.subr.mxu0 0.0
      %1410 = vmatpush1.msra.mxu0 %v1398
      %1411 = vmatprep.subr.mxu0 0.0
      %1412 = vmatpush1.msra.mxu0 %v1397
      %1413 = vmatprep.subr.mxu0 0.0
      %1414 = vmatpush1.msra.mxu0 %v1396
      %1415 = vmatprep.subr.mxu0 0.0
      %1416 = vmatpush1.msra.mxu0 %v1395
      %1417 = vmatprep.subr.mxu0 0.0
      %1418 = vmatpush1.msra.mxu0 %v1394
      %1419 = vmatprep.subr.mxu0 0.0
      %1420 = vmatpush1.msra.mxu0 %v1393
      %1421 = vmatprep.subr.mxu0 0.0
      %1422 = vmatpush1.msra.mxu0 %v1392
      %1423 = vmatprep.subr.mxu0 0.0
      %1424 = vmatpush1.msra.mxu0 %v1391
      %1425 = vmatprep.subr.mxu0 0.0
      %1426 = vmatpush1.msra.mxu0 %v1390
      %1427 = vmatprep.subr.mxu0 0.0
      %1428 = vmatpush1.msra.mxu0 %v1389
      %1429 = vmatprep.subr.mxu0 0.0
      %1430 = vmatpush1.msra.mxu0 %v1388
      %1431 = vmatprep.subr.mxu0 0.0
      %1432 = vmatpush1.msra.mxu0 %v1387
      %1433 = vmatprep.subr.mxu0 0.0
      %1434 = vmatpush1.msra.mxu0 %v1386
      %1435 = vmatprep.subr.mxu0 0.0
      %1436 = vmatpush2.msra.mxu0 0.0
      %1437 = vmatprep.subr.mxu0 0.0
      %1438 = vmatpush2.msra.mxu0 0.0
      %1439 = vmatprep.subr.mxu0 0.0
      %1440 = vmatpush2.msra.mxu0 0.0
      %1441 = vmatprep.subr.mxu0 0.0
      %1442 = vmatpush2.msra.mxu0 0.0
      %1443 = vmatprep.subr.mxu0 0.0
      %1444 = vmatpush2.msra.mxu0 0.0
      %1445 = vmatprep.subr.mxu0 0.0
      %1446 = vmatpush2.msra.mxu0 0.0
      %1447 = vmatprep.subr.mxu0 0.0
      %1448 = vmatpush2.msra.mxu0 0.0
      %1449 = vmatprep.subr.mxu0 0.0
      %1450 = vmatpush2.msra.mxu0 0.0
      %1451 = vmatprep.subr.mxu0 0.0
      %1452 = vmatpush2.msra.mxu0 0.0
      %1453 = vmatprep.subr.mxu0 0.0
      %1454 = vmatpush2.msra.mxu0 0.0
      %1455 = vmatprep.subr.mxu0 0.0
      %1456 = vmatpush2.msra.mxu0 0.0
      %1457 = vmatprep.subr.mxu0 0.0
      %1458 = vmatpush2.msra.mxu0 0.0
      %1459 = vmatprep.subr.mxu0 0.0
      %1460 = vmatpush2.msra.mxu0 0.0
      %1461 = vmatprep.subr.mxu0 0.0
      %1462 = vmatpush2.msra.mxu0 0.0
      %1463 = vmatprep.subr.mxu0 0.0
      %1464 = vmatpush2.msra.mxu0 0.0
      %1465 = vmatprep.subr.mxu0 0.0
      %1466 = vmatpush2.msra.mxu0 0.0
      %1467 = vmatprep.mubr.f32.mxu0 0.0
      %1468 = vmatmul.mubr.f32.gmra.mxu0 %v1385
      %v1469 = vpop.f32.mrf.mxu0
      %v1470 = vadd.f32 %v1402, %v1469
      %v1471 = vpop.f32.mrf.mxu0
      %1472 = vdwg.mxu0
      %v1473 = vlaneseq
      %v1474 = vshrl.u32 %v1473, 7
      %v1475 = vsub.s32 0, %v1474
      %v1476 = vrot.slane %v1470, %v1475
      %1477 = vst [vmem:[%s330] sm:$0xff] %v1476
      %p1478 = scmp.lt.s32.totalorder %s20, 1
      %s1479 = scalar_select %p1478, %s20, 1
      %s1480 = smul.addr %s1479, 8
      %s1481 = scalar_lea.vmem %s9, %s1480
      // Predicated region
      $region57: #{grading_model_forward.1} parent=55 // pred_check
        %p1482 = pneg %p232
      $region58: #{grading_model_forward.1} parent=55 // pred_check_branch
        %1484 = sbr.rel (%p1482) target = $region60
      $region59: #{grading_model_forward.1} parent=55 // pred_region
        _
      $region60: #{grading_model_forward.1} parent=55 // pred_fallthru
        _
    $region56: #{grading_model_forward.1} parent=5 // pred_fallthru
      _
    %p1485 = scmp.le.s32.totalorder 2, %s15
    // Predicated region
    $region61: #{grading_model_forward.1} parent=5 // pred_check
      %p1486 = pneg %p1485
    $region62: #{grading_model_forward.1} parent=5 // pred_check_branch
      %1488 = sbr.rel (%p1486) target = $region64
    $region63: #{grading_model_forward.1} parent=5 // pred_region
      %s1489 = ssub.s32 %s15, 2
      // Predicated region
      $region65: #{grading_model_forward.1} parent=63 // pred_check
        %p1490 = pneg %p238
      $region66: #{grading_model_forward.1} parent=63 // pred_check_branch
        %1492 = sbr.rel (%p1490) target = $region68
      $region67: #{grading_model_forward.1} parent=63 // pred_region
        %p1493 = scmp.lt.s32.totalorder %s21, 1
        %s1494 = scalar_select %p1493, %s21, 1
        %s1495 = smul.addr %s1494, 8
        %s1496 = scalar_lea.vmem %s9, %s1495
      $region68: #{grading_model_forward.1} parent=63 // pred_fallthru
        _
    $region64: #{grading_model_forward.1} parent=5 // pred_fallthru
      _
  $region6: #{grading_model_forward.1} parent=0 // loop_footer
    %s19 = sadd.s32 1, %s15
  $region7: #{grading_model_forward.1} parent=0 // loop_footer_branch
    %14 = sbr.rel target = $region3
  $region8: #{grading_model_forward.1} parent=0 // loop_exit
    _

</llo_original>
